<compile_context>
chip_gen: v5e
topology: v5e:2x2
jax: 0.10.0
libtpu: 0.0.40
codegen_flags: <defaults>
</compile_context>

<pallas_src>
import jax
import jax.numpy as jnp
import numpy as np
from jax.experimental import pallas as pl
from jax.experimental.pallas import tpu as pltpu

# ----------------------------- config -------------------------------------
EMA_ALPHA = 0.999
# alpha_to_threshold(0.999) == round(1 / (1 - 0.999)) == 1000
EMA_THRESHOLD = 1000.0
CAP_SAMPLE_SIZE = True
COMPUTE_STDEV = True

N_CONDENSE = 16          # size of the condensed (sample) dimension
S, L = 32, 128           # condensed stats shape (sublane, lane)
VF_SLOTS = N_CONDENSE + 1  # val slots 0..15, flags in slot 16

# packed-state slot indices (read slots first: 0..3 read, 4..5 write-only)
MEAN, SQ_MEAN, NSTEPS, SSIZE, VAR, STDEV = range(6)
N_STATE = 6


# ----------------------------- kernel --------------------------------------
def running_stats_update_kernel(vf_ref, state_ref, new_state_ref):
    # vf_ref:        (B_blk, 17, S, L)  -- val in slots 0..15, flags in slot 16
    # state_ref:     (B_blk, 6,  S, L)  -- [mean, sq_mean, num_steps, ssize, var, stdev]
    # new_state_ref: (B_blk, 6,  S, L)  -- aliases state_ref's HBM buffer
    flags = vf_ref[:, N_CONDENSE]        # (B_blk, S, L); assumed exactly {0.0, 1.0}
    flags_on = flags != 0.0

    # num_steps += flags
    num_steps = state_ref[:, NSTEPS] + flags
    new_state_ref[:, NSTEPS] = num_steps

    # sample_size update (cap_sample_size=True branch), simplified to a min
    new_state_ref[:, SSIZE] = jnp.minimum(state_ref[:, SSIZE] + flags, EMA_THRESHOLD)

    # condense-dim reductions of the new sample (torch.mean(val, dim=condense)).
    # Fully unrolled single pass: only two f32 accumulators stay live instead
    # of materializing val and val*val.  (Kept off the MXU on purpose.)
    acc = jnp.zeros(flags.shape, jnp.float32)
    acc_sq = jnp.zeros(flags.shape, jnp.float32)
    for i in range(N_CONDENSE):          # static unroll, 16 iterations
        v = vf_ref[:, i]
        acc = acc + v
        acc_sq = acc_sq + v * v
    inv_n = 1.0 / N_CONDENSE
    new_val = acc * inv_n
    new_sq_val = acc_sq * inv_n

    # single_update(): blend of arithmetic mean and EMA.
    # Invariant: stored num_steps >= 0, so num_steps_new == 0 => flags == 0 and
    # the flags_on select below already returns m; only the divide needs guarding.
    below = num_steps <= EMA_THRESHOLD
    inv_safe_n = 1.0 / jnp.maximum(num_steps, 1.0)   # one divide, shared
    steps_m1 = num_steps - 1.0

    def single_update(m, v):
        arithmetic = (m * steps_m1 + v) * inv_safe_n
        ema = m * EMA_ALPHA + v * (1.0 - EMA_ALPHA)
        new_m = jnp.where(below, arithmetic, ema)
        return jnp.where(flags_on, new_m, m)         # masked update

    new_mean = single_update(state_ref[:, MEAN], new_val)
    new_sq_mean = single_update(state_ref[:, SQ_MEAN], new_sq_val)
    # clamp: fp cancellation can make var slightly negative -> NaN in sqrt
    var = jnp.maximum(new_sq_mean - new_mean * new_mean, 0.0)

    new_state_ref[:, MEAN] = new_mean
    new_state_ref[:, SQ_MEAN] = new_sq_mean
    new_state_ref[:, VAR] = var
    new_state_ref[:, STDEV] = jnp.sqrt(var)


# ----------------------------- wrapper --------------------------------------
def running_stats_update(val_flags, state, *, b_blk=None):
    """Batched RunningStats.update().

    val_flags: (B, 17, S, L) -- sample val in slots 0..15, flags mask in slot 16.
    state:     (B, 6, S, L)  -- packed [mean, square_mean, num_steps, sample_size,
                                         var, stdev]; updated in place (aliased).
    """
    B = state.shape[0]
    if b_blk is None:
        b_blk = 1
        for cand in (8, 4, 2, 1):
            if B % cand == 0:
                b_blk = cand
                break
    assert B % b_blk == 0
    grid = (B // b_blk,)

    vf_spec = pl.BlockSpec((b_blk, VF_SLOTS, S, L), lambda b: (b, 0, 0, 0))
    st_spec = pl.BlockSpec((b_blk, N_STATE, S, L), lambda b: (b, 0, 0, 0))

    # tiny, honest cost model so XLA can overlap this call with its neighbors
    cost = pl.CostEstimate(
        flops=int(B * S * L * (3 * N_CONDENSE + 30)),
        transcendentals=int(B * S * L),                       # sqrt
        bytes_accessed=int(4 * B * S * L * (VF_SLOTS + 2 * N_STATE)),
    )

    return pl.pallas_call(
        running_stats_update_kernel,
        out_shape=jax.ShapeDtypeStruct(state.shape, state.dtype),
        grid=grid,
        in_specs=[vf_spec, st_spec],
        out_specs=st_spec,
        input_output_aliases={1: 0},     # update the packed state in place
        compiler_params=pltpu.CompilerParams(
            dimension_semantics=("parallel",)),  # megacore-shard the batch on v7x
        cost_estimate=cost,
    )(val_flags, state)


# ----------------------------- reference (pure JAX) -------------------------
def running_stats_update_ref(val, mean, square_mean, num_steps, sample_size, flags):
    """Batched pure-JAX transcription of RunningStats.update (condense axis = 1)."""
    num_steps_new = num_steps + flags
    ss = sample_size + flags
    below_ss = (ss < EMA_THRESHOLD).astype(ss.dtype)
    sample_size_new = ss * below_ss + EMA_THRESHOLD * (1.0 - below_ss)

    new_val = jnp.mean(val, axis=1)
    new_sq_val = jnp.mean(val * val, axis=1)

    below = (num_steps_new <= EMA_THRESHOLD).astype(num_steps_new.dtype)
    above = 1.0 - below
    zero = num_steps_new == 0.0
    safe_n = jnp.where(zero, 1.0, num_steps_new)

    def single_update(m, v):
        arithmetic = (m * (num_steps_new - 1.0) + v) / safe_n
        ema = m * EMA_ALPHA + v * (1.0 - EMA_ALPHA)
        new_m = jnp.where(zero, 0.0, arithmetic * below + ema * above)
        return new_m * flags + m * (1.0 - flags)

    mean_new = single_update(mean, new_val)
    sq_new = single_update(square_mean, new_sq_val)
    var = jnp.maximum(sq_new - mean_new * mean_new, 0.0)
    return mean_new, sq_new, var, jnp.sqrt(var), num_steps_new, sample_size_new


# ----------------------------- main ------------------------------------------
if __name__ == "__main__":
    B = 8                                   # number of RunningStats instances
    key = jax.random.PRNGKey(0)
    k_val, k_mean, k_var, k_flags = jax.random.split(key, 4)

    # deterministic synthetic "buffer" state (no checkpoint)
    val = jax.random.uniform(k_val, (B, N_CONDENSE, S, L), jnp.float32, 0.0, 2.0)
    mean = jax.random.uniform(k_mean, (B, S, L), jnp.float32, 0.0, 1.0)
    # ensure initial var >= 0 so stdev is well defined
    square_mean = mean * mean + jax.random.uniform(k_var, (B, S, L), jnp.float32, 0.1, 1.0)
    var0 = square_mean - mean * mean
    stdev0 = jnp.sqrt(var0)
    # mix elements below / above the EMA threshold to exercise both branches
    row = jax.lax.broadcasted_iota(jnp.float32, (B, S, L), 1)
    num_steps = jnp.where(row < S // 2, 500.0, 1500.0)
    sample_size = jnp.minimum(num_steps, EMA_THRESHOLD)
    flags = (jax.random.uniform(k_flags, (B, S, L)) > 0.3).astype(jnp.float32)

    # pure-JAX reference on the unpacked originals
    refs = running_stats_update_ref(val, mean, square_mean, num_steps, sample_size, flags)

    # packed inputs (a real producer would emit these layouts directly)
    val_flags = jnp.concatenate([val, flags[:, None]], axis=1)        # (B, 17, S, L)
    state = jnp.stack(
        [mean, square_mean, num_steps, sample_size, var0, stdev0], axis=1)  # (B, 6, S, L)

    new_state = running_stats_update(val_flags, state, b_blk=4)
    new_state = jax.block_until_ready(new_state)

    kernel_outs = (
        new_state[:, MEAN], new_state[:, SQ_MEAN], new_state[:, VAR],
        new_state[:, STDEV], new_state[:, NSTEPS], new_state[:, SSIZE],
    )
    for o, r in zip(kernel_outs, refs):
        np.testing.assert_allclose(np.asarray(o), np.asarray(r), rtol=1e-5, atol=1e-5)

    print("KERNEL_OK")
</pallas_src>

<mosaic_0001>
module attributes {stable_mosaic.version = 11 : i64} {
  func.func @running_stats_update_kernel(%arg0: i32, %arg1: memref<4x17x32x128xf32, #tpu.memory_space<vmem>>, %arg2: memref<4x6x32x128xf32, #tpu.memory_space<vmem>>, %arg3: memref<4x6x32x128xf32, #tpu.memory_space<vmem>>) attributes {dimension_semantics = [#tpu.dimension_semantics<parallel>], iteration_bounds = array<i64: 2>, scalar_prefetch = 0 : i64, scratch_operands = 0 : i64, tpu.core_type = #tpu.core_type<tc>, window_params = [{transform_indices = @transform_0, window_bounds = array<i64: 4, 17, 32, 128>}, {transform_indices = @transform_1, window_bounds = array<i64: 4, 6, 32, 128>}, {transform_indices = @transform_2, window_bounds = array<i64: 4, 6, 32, 128>}]} {
    %c0 = arith.constant 0 : index
    %c16 = arith.constant 16 : index
    %c0_0 = arith.constant 0 : index
    %c0_1 = arith.constant 0 : index
    %0 = vector.load %arg1[%c0, %c16, %c0_0, %c0_1] : memref<4x17x32x128xf32, #tpu.memory_space<vmem>>, vector<4x1x32x128xf32>
    %1 = vector.shape_cast %0 : vector<4x1x32x128xf32> to vector<4x32x128xf32>
    %cst = arith.constant 0.000000e+00 : f32
    %2 = vector.broadcast %cst : f32 to vector<4x32x128xf32>
    %3 = arith.cmpf one, %1, %2 : vector<4x32x128xf32>
    %c0_2 = arith.constant 0 : index
    %c2 = arith.constant 2 : index
    %c0_3 = arith.constant 0 : index
    %c0_4 = arith.constant 0 : index
    %4 = vector.load %arg2[%c0_2, %c2, %c0_3, %c0_4] : memref<4x6x32x128xf32, #tpu.memory_space<vmem>>, vector<4x1x32x128xf32>
    %5 = vector.shape_cast %4 : vector<4x1x32x128xf32> to vector<4x32x128xf32>
    %6 = arith.addf %5, %1 : vector<4x32x128xf32>
    %c0_5 = arith.constant 0 : index
    %c2_6 = arith.constant 2 : index
    %c0_7 = arith.constant 0 : index
    %c0_8 = arith.constant 0 : index
    %7 = vector.load %arg3[%c0_5, %c2_6, %c0_7, %c0_8] : memref<4x6x32x128xf32, #tpu.memory_space<vmem>>, vector<4x1x32x128xf32>
    %8 = vector.shape_cast %7 : vector<4x1x32x128xf32> to vector<4x32x128xf32>
    %9 = vector.shape_cast %6 : vector<4x32x128xf32> to vector<4x1x32x128xf32>
    tpu.vector_store %arg3[%c0_5, %c2_6, %c0_7, %c0_8], %9 {strides = array<i32>} : memref<4x6x32x128xf32, #tpu.memory_space<vmem>>, vector<4x1x32x128xf32>,
    %c0_9 = arith.constant 0 : index
    %c3 = arith.constant 3 : index
    %c0_10 = arith.constant 0 : index
    %c0_11 = arith.constant 0 : index
    %10 = vector.load %arg2[%c0_9, %c3, %c0_10, %c0_11] : memref<4x6x32x128xf32, #tpu.memory_space<vmem>>, vector<4x1x32x128xf32>
    %11 = vector.shape_cast %10 : vector<4x1x32x128xf32> to vector<4x32x128xf32>
    %12 = arith.addf %11, %1 : vector<4x32x128xf32>
    %cst_12 = arith.constant 1.000000e+03 : f32
    %13 = vector.broadcast %cst_12 : f32 to vector<4x32x128xf32>
    %14 = arith.minimumf %12, %13 : vector<4x32x128xf32>
    %c0_13 = arith.constant 0 : index
    %c3_14 = arith.constant 3 : index
    %c0_15 = arith.constant 0 : index
    %c0_16 = arith.constant 0 : index
    %15 = vector.load %arg3[%c0_13, %c3_14, %c0_15, %c0_16] : memref<4x6x32x128xf32, #tpu.memory_space<vmem>>, vector<4x1x32x128xf32>
    %16 = vector.shape_cast %15 : vector<4x1x32x128xf32> to vector<4x32x128xf32>
    %17 = vector.shape_cast %14 : vector<4x32x128xf32> to vector<4x1x32x128xf32>
    tpu.vector_store %arg3[%c0_13, %c3_14, %c0_15, %c0_16], %17 {strides = array<i32>} : memref<4x6x32x128xf32, #tpu.memory_space<vmem>>, vector<4x1x32x128xf32>,
    %cst_17 = arith.constant 0.000000e+00 : f32
    %18 = vector.broadcast %cst_17 : f32 to vector<4x32x128xf32>
    %cst_18 = arith.constant 0.000000e+00 : f32
    %19 = vector.broadcast %cst_18 : f32 to vector<4x32x128xf32>
    %c0_19 = arith.constant 0 : index
    %c0_20 = arith.constant 0 : index
    %c0_21 = arith.constant 0 : index
    %c0_22 = arith.constant 0 : index
    %20 = vector.load %arg1[%c0_19, %c0_20, %c0_21, %c0_22] : memref<4x17x32x128xf32, #tpu.memory_space<vmem>>, vector<4x1x32x128xf32>
    %21 = vector.shape_cast %20 : vector<4x1x32x128xf32> to vector<4x32x128xf32>
    %22 = arith.addf %18, %21 : vector<4x32x128xf32>
    %23 = arith.mulf %21, %21 : vector<4x32x128xf32>
    %24 = arith.addf %19, %23 : vector<4x32x128xf32>
    %c0_23 = arith.constant 0 : index
    %c1 = arith.constant 1 : index
    %c0_24 = arith.constant 0 : index
    %c0_25 = arith.constant 0 : index
    %25 = vector.load %arg1[%c0_23, %c1, %c0_24, %c0_25] : memref<4x17x32x128xf32, #tpu.memory_space<vmem>>, vector<4x1x32x128xf32>
    %26 = vector.shape_cast %25 : vector<4x1x32x128xf32> to vector<4x32x128xf32>
    %27 = arith.addf %22, %26 : vector<4x32x128xf32>
    %28 = arith.mulf %26, %26 : vector<4x32x128xf32>
    %29 = arith.addf %24, %28 : vector<4x32x128xf32>
    %c0_26 = arith.constant 0 : index
    %c2_27 = arith.constant 2 : index
    %c0_28 = arith.constant 0 : index
    %c0_29 = arith.constant 0 : index
    %30 = vector.load %arg1[%c0_26, %c2_27, %c0_28, %c0_29] : memref<4x17x32x128xf32, #tpu.memory_space<vmem>>, vector<4x1x32x128xf32>
    %31 = vector.shape_cast %30 : vector<4x1x32x128xf32> to vector<4x32x128xf32>
    %32 = arith.addf %27, %31 : vector<4x32x128xf32>
    %33 = arith.mulf %31, %31 : vector<4x32x128xf32>
    %34 = arith.addf %29, %33 : vector<4x32x128xf32>
    %c0_30 = arith.constant 0 : index
    %c3_31 = arith.constant 3 : index
    %c0_32 = arith.constant 0 : index
    %c0_33 = arith.constant 0 : index
    %35 = vector.load %arg1[%c0_30, %c3_31, %c0_32, %c0_33] : memref<4x17x32x128xf32, #tpu.memory_space<vmem>>, vector<4x1x32x128xf32>
    %36 = vector.shape_cast %35 : vector<4x1x32x128xf32> to vector<4x32x128xf32>
    %37 = arith.addf %32, %36 : vector<4x32x128xf32>
    %38 = arith.mulf %36, %36 : vector<4x32x128xf32>
    %39 = arith.addf %34, %38 : vector<4x32x128xf32>
    %c0_34 = arith.constant 0 : index
    %c4 = arith.constant 4 : index
    %c0_35 = arith.constant 0 : index
    %c0_36 = arith.constant 0 : index
    %40 = vector.load %arg1[%c0_34, %c4, %c0_35, %c0_36] : memref<4x17x32x128xf32, #tpu.memory_space<vmem>>, vector<4x1x32x128xf32>
    %41 = vector.shape_cast %40 : vector<4x1x32x128xf32> to vector<4x32x128xf32>
    %42 = arith.addf %37, %41 : vector<4x32x128xf32>
    %43 = arith.mulf %41, %41 : vector<4x32x128xf32>
    %44 = arith.addf %39, %43 : vector<4x32x128xf32>
    %c0_37 = arith.constant 0 : index
    %c5 = arith.constant 5 : index
    %c0_38 = arith.constant 0 : index
    %c0_39 = arith.constant 0 : index
    %45 = vector.load %arg1[%c0_37, %c5, %c0_38, %c0_39] : memref<4x17x32x128xf32, #tpu.memory_space<vmem>>, vector<4x1x32x128xf32>
    %46 = vector.shape_cast %45 : vector<4x1x32x128xf32> to vector<4x32x128xf32>
    %47 = arith.addf %42, %46 : vector<4x32x128xf32>
    %48 = arith.mulf %46, %46 : vector<4x32x128xf32>
    %49 = arith.addf %44, %48 : vector<4x32x128xf32>
    %c0_40 = arith.constant 0 : index
    %c6 = arith.constant 6 : index
    %c0_41 = arith.constant 0 : index
    %c0_42 = arith.constant 0 : index
    %50 = vector.load %arg1[%c0_40, %c6, %c0_41, %c0_42] : memref<4x17x32x128xf32, #tpu.memory_space<vmem>>, vector<4x1x32x128xf32>
    %51 = vector.shape_cast %50 : vector<4x1x32x128xf32> to vector<4x32x128xf32>
    %52 = arith.addf %47, %51 : vector<4x32x128xf32>
    %53 = arith.mulf %51, %51 : vector<4x32x128xf32>
    %54 = arith.addf %49, %53 : vector<4x32x128xf32>
    %c0_43 = arith.constant 0 : index
    %c7 = arith.constant 7 : index
    %c0_44 = arith.constant 0 : index
    %c0_45 = arith.constant 0 : index
    %55 = vector.load %arg1[%c0_43, %c7, %c0_44, %c0_45] : memref<4x17x32x128xf32, #tpu.memory_space<vmem>>, vector<4x1x32x128xf32>
    %56 = vector.shape_cast %55 : vector<4x1x32x128xf32> to vector<4x32x128xf32>
    %57 = arith.addf %52, %56 : vector<4x32x128xf32>
    %58 = arith.mulf %56, %56 : vector<4x32x128xf32>
    %59 = arith.addf %54, %58 : vector<4x32x128xf32>
    %c0_46 = arith.constant 0 : index
    %c8 = arith.constant 8 : index
    %c0_47 = arith.constant 0 : index
    %c0_48 = arith.constant 0 : index
    %60 = vector.load %arg1[%c0_46, %c8, %c0_47, %c0_48] : memref<4x17x32x128xf32, #tpu.memory_space<vmem>>, vector<4x1x32x128xf32>
    %61 = vector.shape_cast %60 : vector<4x1x32x128xf32> to vector<4x32x128xf32>
    %62 = arith.addf %57, %61 : vector<4x32x128xf32>
    %63 = arith.mulf %61, %61 : vector<4x32x128xf32>
    %64 = arith.addf %59, %63 : vector<4x32x128xf32>
    %c0_49 = arith.constant 0 : index
    %c9 = arith.constant 9 : index
    %c0_50 = arith.constant 0 : index
    %c0_51 = arith.constant 0 : index
    %65 = vector.load %arg1[%c0_49, %c9, %c0_50, %c0_51] : memref<4x17x32x128xf32, #tpu.memory_space<vmem>>, vector<4x1x32x128xf32>
    %66 = vector.shape_cast %65 : vector<4x1x32x128xf32> to vector<4x32x128xf32>
    %67 = arith.addf %62, %66 : vector<4x32x128xf32>
    %68 = arith.mulf %66, %66 : vector<4x32x128xf32>
    %69 = arith.addf %64, %68 : vector<4x32x128xf32>
    %c0_52 = arith.constant 0 : index
    %c10 = arith.constant 10 : index
    %c0_53 = arith.constant 0 : index
    %c0_54 = arith.constant 0 : index
    %70 = vector.load %arg1[%c0_52, %c10, %c0_53, %c0_54] : memref<4x17x32x128xf32, #tpu.memory_space<vmem>>, vector<4x1x32x128xf32>
    %71 = vector.shape_cast %70 : vector<4x1x32x128xf32> to vector<4x32x128xf32>
    %72 = arith.addf %67, %71 : vector<4x32x128xf32>
    %73 = arith.mulf %71, %71 : vector<4x32x128xf32>
    %74 = arith.addf %69, %73 : vector<4x32x128xf32>
    %c0_55 = arith.constant 0 : index
    %c11 = arith.constant 11 : index
    %c0_56 = arith.constant 0 : index
    %c0_57 = arith.constant 0 : index
    %75 = vector.load %arg1[%c0_55, %c11, %c0_56, %c0_57] : memref<4x17x32x128xf32, #tpu.memory_space<vmem>>, vector<4x1x32x128xf32>
    %76 = vector.shape_cast %75 : vector<4x1x32x128xf32> to vector<4x32x128xf32>
    %77 = arith.addf %72, %76 : vector<4x32x128xf32>
    %78 = arith.mulf %76, %76 : vector<4x32x128xf32>
    %79 = arith.addf %74, %78 : vector<4x32x128xf32>
    %c0_58 = arith.constant 0 : index
    %c12 = arith.constant 12 : index
    %c0_59 = arith.constant 0 : index
    %c0_60 = arith.constant 0 : index
    %80 = vector.load %arg1[%c0_58, %c12, %c0_59, %c0_60] : memref<4x17x32x128xf32, #tpu.memory_space<vmem>>, vector<4x1x32x128xf32>
    %81 = vector.shape_cast %80 : vector<4x1x32x128xf32> to vector<4x32x128xf32>
    %82 = arith.addf %77, %81 : vector<4x32x128xf32>
    %83 = arith.mulf %81, %81 : vector<4x32x128xf32>
    %84 = arith.addf %79, %83 : vector<4x32x128xf32>
    %c0_61 = arith.constant 0 : index
    %c13 = arith.constant 13 : index
    %c0_62 = arith.constant 0 : index
    %c0_63 = arith.constant 0 : index
    %85 = vector.load %arg1[%c0_61, %c13, %c0_62, %c0_63] : memref<4x17x32x128xf32, #tpu.memory_space<vmem>>, vector<4x1x32x128xf32>
    %86 = vector.shape_cast %85 : vector<4x1x32x128xf32> to vector<4x32x128xf32>
    %87 = arith.addf %82, %86 : vector<4x32x128xf32>
    %88 = arith.mulf %86, %86 : vector<4x32x128xf32>
    %89 = arith.addf %84, %88 : vector<4x32x128xf32>
    %c0_64 = arith.constant 0 : index
    %c14 = arith.constant 14 : index
    %c0_65 = arith.constant 0 : index
    %c0_66 = arith.constant 0 : index
    %90 = vector.load %arg1[%c0_64, %c14, %c0_65, %c0_66] : memref<4x17x32x128xf32, #tpu.memory_space<vmem>>, vector<4x1x32x128xf32>
    %91 = vector.shape_cast %90 : vector<4x1x32x128xf32> to vector<4x32x128xf32>
    %92 = arith.addf %87, %91 : vector<4x32x128xf32>
    %93 = arith.mulf %91, %91 : vector<4x32x128xf32>
    %94 = arith.addf %89, %93 : vector<4x32x128xf32>
    %c0_67 = arith.constant 0 : index
    %c15 = arith.constant 15 : index
    %c0_68 = arith.constant 0 : index
    %c0_69 = arith.constant 0 : index
    %95 = vector.load %arg1[%c0_67, %c15, %c0_68, %c0_69] : memref<4x17x32x128xf32, #tpu.memory_space<vmem>>, vector<4x1x32x128xf32>
    %96 = vector.shape_cast %95 : vector<4x1x32x128xf32> to vector<4x32x128xf32>
    %97 = arith.addf %92, %96 : vector<4x32x128xf32>
    %98 = arith.mulf %96, %96 : vector<4x32x128xf32>
    %99 = arith.addf %94, %98 : vector<4x32x128xf32>
    %cst_70 = arith.constant 6.250000e-02 : f32
    %100 = vector.broadcast %cst_70 : f32 to vector<4x32x128xf32>
    %101 = arith.mulf %97, %100 : vector<4x32x128xf32>
    %cst_71 = arith.constant 6.250000e-02 : f32
    %102 = vector.broadcast %cst_71 : f32 to vector<4x32x128xf32>
    %103 = arith.mulf %99, %102 : vector<4x32x128xf32>
    %cst_72 = arith.constant 1.000000e+03 : f32
    %104 = vector.broadcast %cst_72 : f32 to vector<4x32x128xf32>
    %105 = arith.cmpf ole, %6, %104 : vector<4x32x128xf32>
    %cst_73 = arith.constant 1.000000e+00 : f32
    %106 = vector.broadcast %cst_73 : f32 to vector<4x32x128xf32>
    %107 = arith.maximumf %6, %106 : vector<4x32x128xf32>
    %cst_74 = arith.constant 1.000000e+00 : f32
    %108 = vector.broadcast %cst_74 : f32 to vector<4x32x128xf32>
    %109 = arith.divf %108, %107 : vector<4x32x128xf32>
    %cst_75 = arith.constant 1.000000e+00 : f32
    %110 = vector.broadcast %cst_75 : f32 to vector<4x32x128xf32>
    %111 = arith.subf %6, %110 : vector<4x32x128xf32>
    %c0_76 = arith.constant 0 : index
    %c0_77 = arith.constant 0 : index
    %c0_78 = arith.constant 0 : index
    %c0_79 = arith.constant 0 : index
    %112 = vector.load %arg2[%c0_76, %c0_77, %c0_78, %c0_79] : memref<4x6x32x128xf32, #tpu.memory_space<vmem>>, vector<4x1x32x128xf32>
    %113 = vector.shape_cast %112 : vector<4x1x32x128xf32> to vector<4x32x128xf32>
    %114 = arith.mulf %113, %111 : vector<4x32x128xf32>
    %115 = arith.addf %114, %101 : vector<4x32x128xf32>
    %116 = arith.mulf %115, %109 : vector<4x32x128xf32>
    %cst_80 = arith.constant 9.990000e-01 : f32
    %117 = vector.broadcast %cst_80 : f32 to vector<4x32x128xf32>
    %118 = arith.mulf %113, %117 : vector<4x32x128xf32>
    %cst_81 = arith.constant 1.000000e-03 : f32
    %119 = vector.broadcast %cst_81 : f32 to vector<4x32x128xf32>
    %120 = arith.mulf %101, %119 : vector<4x32x128xf32>
    %121 = arith.addf %118, %120 : vector<4x32x128xf32>
    %122 = arith.select %105, %116, %121 : vector<4x32x128xi1>, vector<4x32x128xf32>
    %123 = arith.select %3, %122, %113 : vector<4x32x128xi1>, vector<4x32x128xf32>
    %c0_82 = arith.constant 0 : index
    %c1_83 = arith.constant 1 : index
    %c0_84 = arith.constant 0 : index
    %c0_85 = arith.constant 0 : index
    %124 = vector.load %arg2[%c0_82, %c1_83, %c0_84, %c0_85] : memref<4x6x32x128xf32, #tpu.memory_space<vmem>>, vector<4x1x32x128xf32>
    %125 = vector.shape_cast %124 : vector<4x1x32x128xf32> to vector<4x32x128xf32>
    %126 = arith.mulf %125, %111 : vector<4x32x128xf32>
    %127 = arith.addf %126, %103 : vector<4x32x128xf32>
    %128 = arith.mulf %127, %109 : vector<4x32x128xf32>
    %cst_86 = arith.constant 9.990000e-01 : f32
    %129 = vector.broadcast %cst_86 : f32 to vector<4x32x128xf32>
    %130 = arith.mulf %125, %129 : vector<4x32x128xf32>
    %cst_87 = arith.constant 1.000000e-03 : f32
    %131 = vector.broadcast %cst_87 : f32 to vector<4x32x128xf32>
    %132 = arith.mulf %103, %131 : vector<4x32x128xf32>
    %133 = arith.addf %130, %132 : vector<4x32x128xf32>
    %134 = arith.select %105, %128, %133 : vector<4x32x128xi1>, vector<4x32x128xf32>
    %135 = arith.select %3, %134, %125 : vector<4x32x128xi1>, vector<4x32x128xf32>
    %136 = arith.mulf %123, %123 : vector<4x32x128xf32>
    %137 = arith.subf %135, %136 : vector<4x32x128xf32>
    %cst_88 = arith.constant 0.000000e+00 : f32
    %138 = vector.broadcast %cst_88 : f32 to vector<4x32x128xf32>
    %139 = arith.maximumf %137, %138 : vector<4x32x128xf32>
    %c0_89 = arith.constant 0 : index
    %c0_90 = arith.constant 0 : index
    %c0_91 = arith.constant 0 : index
    %c0_92 = arith.constant 0 : index
    %140 = vector.load %arg3[%c0_89, %c0_90, %c0_91, %c0_92] : memref<4x6x32x128xf32, #tpu.memory_space<vmem>>, vector<4x1x32x128xf32>
    %141 = vector.shape_cast %140 : vector<4x1x32x128xf32> to vector<4x32x128xf32>
    %142 = vector.shape_cast %123 : vector<4x32x128xf32> to vector<4x1x32x128xf32>
    tpu.vector_store %arg3[%c0_89, %c0_90, %c0_91, %c0_92], %142 {strides = array<i32>} : memref<4x6x32x128xf32, #tpu.memory_space<vmem>>, vector<4x1x32x128xf32>,
    %c0_93 = arith.constant 0 : index
    %c1_94 = arith.constant 1 : index
    %c0_95 = arith.constant 0 : index
    %c0_96 = arith.constant 0 : index
    %143 = vector.load %arg3[%c0_93, %c1_94, %c0_95, %c0_96] : memref<4x6x32x128xf32, #tpu.memory_space<vmem>>, vector<4x1x32x128xf32>
    %144 = vector.shape_cast %143 : vector<4x1x32x128xf32> to vector<4x32x128xf32>
    %145 = vector.shape_cast %135 : vector<4x32x128xf32> to vector<4x1x32x128xf32>
    tpu.vector_store %arg3[%c0_93, %c1_94, %c0_95, %c0_96], %145 {strides = array<i32>} : memref<4x6x32x128xf32, #tpu.memory_space<vmem>>, vector<4x1x32x128xf32>,
    %c0_97 = arith.constant 0 : index
    %c4_98 = arith.constant 4 : index
    %c0_99 = arith.constant 0 : index
    %c0_100 = arith.constant 0 : index
    %146 = vector.load %arg3[%c0_97, %c4_98, %c0_99, %c0_100] : memref<4x6x32x128xf32, #tpu.memory_space<vmem>>, vector<4x1x32x128xf32>
    %147 = vector.shape_cast %146 : vector<4x1x32x128xf32> to vector<4x32x128xf32>
    %148 = vector.shape_cast %139 : vector<4x32x128xf32> to vector<4x1x32x128xf32>
    tpu.vector_store %arg3[%c0_97, %c4_98, %c0_99, %c0_100], %148 {strides = array<i32>} : memref<4x6x32x128xf32, #tpu.memory_space<vmem>>, vector<4x1x32x128xf32>,
    %149 = math.sqrt %139 : vector<4x32x128xf32>
    %c0_101 = arith.constant 0 : index
    %c5_102 = arith.constant 5 : index
    %c0_103 = arith.constant 0 : index
    %c0_104 = arith.constant 0 : index
    %150 = vector.load %arg3[%c0_101, %c5_102, %c0_103, %c0_104] : memref<4x6x32x128xf32, #tpu.memory_space<vmem>>, vector<4x1x32x128xf32>
    %151 = vector.shape_cast %150 : vector<4x1x32x128xf32> to vector<4x32x128xf32>
    %152 = vector.shape_cast %149 : vector<4x32x128xf32> to vector<4x1x32x128xf32>
    tpu.vector_store %arg3[%c0_101, %c5_102, %c0_103, %c0_104], %152 {strides = array<i32>} : memref<4x6x32x128xf32, #tpu.memory_space<vmem>>, vector<4x1x32x128xf32>,
    return
  }
  func.func @transform_0(%arg0: i32) -> (i32, i32, i32, i32) {
    %c0_i32 = arith.constant 0 : i32
    %c0_i32_0 = arith.constant 0 : i32
    %c0_i32_1 = arith.constant 0 : i32
    %c0_i32_2 = arith.constant 0 : i32
    return %arg0, %c0_i32, %c0_i32_0, %c0_i32_1 : i32, i32, i32, i32
  }
  func.func @transform_1(%arg0: i32) -> (i32, i32, i32, i32) {
    %c0_i32 = arith.constant 0 : i32
    %c0_i32_0 = arith.constant 0 : i32
    %c0_i32_1 = arith.constant 0 : i32
    %c0_i32_2 = arith.constant 0 : i32
    return %arg0, %c0_i32, %c0_i32_0, %c0_i32_1 : i32, i32, i32, i32
  }
  func.func @transform_2(%arg0: i32) -> (i32, i32, i32, i32) {
    %c0_i32 = arith.constant 0 : i32
    %c0_i32_0 = arith.constant 0 : i32
    %c0_i32_1 = arith.constant 0 : i32
    %c0_i32_2 = arith.constant 0 : i32
    return %arg0, %c0_i32, %c0_i32_0, %c0_i32_1 : i32, i32, i32, i32
  }
}

</mosaic_0001>

<llo_original>
// kernel: tpu_custom_call.1
$region0: #{tpu_custom_call.1}
  #allocation0 [shape = 'u32[]', space=smem, size = 0x4, offset = 0x4, fixed_abs, tag = 'smem constant byte address 0x4 - core index']
  #allocation1 [shape = 'u32[72,128]{1,0:T(1,128)}', space=vmem, size = 0x9000, scoped, tag = 'internal scratch']
  %s0 = inlined_call_operand.hbm [shape: f32[8,17,32,128], index: 0, kind: input, shape index: {}]
  %s1 = inlined_call_operand.hbm [shape: f32[8,6,32,128], index: 1, kind: input, shape index: {}, may-alias: {1,2}]
  %s2 = inlined_call_operand.hbm [shape: f32[8,6,32,128], index: 2, kind: output, shape index: {}, may-alias: {1,2}]
  %s3 = sld [smem:[#allocation0]]
  $region49: #{tpu_custom_call.1} parent=0
    _
  %s5 = ssub.s32 1, %s3
  %s6 = scalar_select 0, %s5, %s3
  $region1: #{tpu_custom_call.1} parent=0
    #allocation2 [shape = 'u8[2228224]{0}', space=vmem, size = 0x220000, scoped, tag = 'input window, operand 0']
    #allocation3 [shape = 's32[2]{0}', space=sflag, size = 0x8, scoped, tag = 'scoped memory for tpu_custom_call.1']
    #allocation4 [shape = 's32[2]{0}', space=sflag, size = 0x8, scoped, tag = 'scoped memory for tpu_custom_call.1']
    #allocation5 [shape = 'u8[786432]{0}', space=vmem, size = 0xc0000, scoped, tag = 'input window, operand 1']
    #allocation6 [shape = 's32[2]{0}', space=sflag, size = 0x8, scoped, tag = 'scoped memory for tpu_custom_call.1']
    #allocation7 [shape = 'u8[786432]{0}', space=vmem, size = 0xc0000, scoped, tag = 'output window, operand 0']
    %7 = vsyncpa [#allocation3], 0
    %s8 = scalar_lea.sflag [#allocation3], 1
    %9 = vsyncpa %s8, 0
    %10 = vsyncpa [#allocation6], 0
    %s11 = scalar_lea.sflag [#allocation6], 1
    %12 = vsyncpa %s11, 0
    %13 = vsyncpa [#allocation4], 0
    %s14 = scalar_lea.sflag [#allocation4], 1
    %15 = vsyncpa %s14, 0
    loop: start=0, step=1, limit=4
    $region2: #{tpu_custom_call.1} parent=1 // loop_pre_header
      _
    $region3: #{tpu_custom_call.1} parent=1 // loop_header
      %s17 = sphi 0, %s21
      %p18 = scmp.ge.s32.totalorder %s17, 4
      %s27 = sphi 0, %s29
      %s30 = sphi 0, %s27
      %s31 = sphi 0, %s30
      %s47 = sphi 0, %s31
      %s53 = sphi 0, %s55
      %s56 = sphi 0, %s53
      %s57 = sphi 0, %s56
      %s73 = sphi 0, %s57
      %s79 = sphi 0, %s81
      %s82 = sphi 0, %s79
      %s83 = sphi 0, %s82
      %s99 = sphi 0, %s83
    $region4: #{tpu_custom_call.1} parent=1 // loop_header_branch
      %20 = sbr.rel (%p18) target = $region8
    $region5: #{tpu_custom_call.1} parent=1 // loop_body
      %s22 = ssub.s32 %s17, 1
      %s23 = ssub.s32 %s17, 2
      %s24 = sadd.s32 %s17, 1
      %s25 = ssub.s32 %s17, %s24
      %p26 = scmp.eq.s32.totalorder %s25, 0
      %s28 = sadd.s32 %s27, 1
      %s29 = scalar_select %p26, %s27, %s28
      %p32 = pneg %p26
      %p33 = scmp.eq.s32.totalorder %s17, 1
      %p34 = por %p32, %p33
      %p35 = scmp.ne.s32.totalorder %s27, %s30
      %p36 = scmp.eq.s32.totalorder %s17, 0
      %p37 = por %p35, %p36
      %p38 = scmp.ne.s32.totalorder %s27, %s30
      %p39 = scmp.eq.s32.totalorder %s22, 1
      %p40 = por %p38, %p39
      %p41 = scmp.ne.s32.totalorder %s30, %s31
      %p42 = scmp.eq.s32.totalorder %s22, 0
      %p43 = por %p41, %p42
      %p44 = scmp.ne.s32.totalorder %s30, %s31
      %p45 = scmp.eq.s32.totalorder %s23, 1
      %p46 = por %p44, %p45
      %p48 = scmp.ne.s32.totalorder %s31, %s47
      %p49 = scmp.eq.s32.totalorder %s23, 0
      %p50 = por %p48, %p49
      %s51 = ssub.s32 %s17, %s24
      %p52 = scmp.eq.s32.totalorder %s51, 0
      %s54 = sadd.s32 %s53, 1
      %s55 = scalar_select %p52, %s53, %s54
      %p58 = pneg %p52
      %p59 = scmp.eq.s32.totalorder %s17, 1
      %p60 = por %p58, %p59
      %p61 = scmp.ne.s32.totalorder %s53, %s56
      %p62 = scmp.eq.s32.totalorder %s17, 0
      %p63 = por %p61, %p62
      %p64 = scmp.ne.s32.totalorder %s53, %s56
      %p65 = scmp.eq.s32.totalorder %s22, 1
      %p66 = por %p64, %p65
      %p67 = scmp.ne.s32.totalorder %s56, %s57
      %p68 = scmp.eq.s32.totalorder %s22, 0
      %p69 = por %p67, %p68
      %p70 = scmp.ne.s32.totalorder %s56, %s57
      %p71 = scmp.eq.s32.totalorder %s23, 1
      %p72 = por %p70, %p71
      %p74 = scmp.ne.s32.totalorder %s57, %s73
      %p75 = scmp.eq.s32.totalorder %s23, 0
      %p76 = por %p74, %p75
      %s77 = ssub.s32 %s17, %s24
      %p78 = scmp.eq.s32.totalorder %s77, 0
      %s80 = sadd.s32 %s79, 1
      %s81 = scalar_select %p78, %s79, %s80
      %p84 = pneg %p78
      %p85 = scmp.eq.s32.totalorder %s17, 1
      %p86 = por %p84, %p85
      %p87 = scmp.ne.s32.totalorder %s79, %s82
      %p88 = scmp.eq.s32.totalorder %s17, 0
      %p89 = por %p87, %p88
      %p90 = scmp.ne.s32.totalorder %s79, %s82
      %p91 = scmp.eq.s32.totalorder %s22, 1
      %p92 = por %p90, %p91
      %p93 = scmp.ne.s32.totalorder %s82, %s83
      %p94 = scmp.eq.s32.totalorder %s22, 0
      %p95 = por %p93, %p94
      %p96 = scmp.ne.s32.totalorder %s82, %s83
      %p97 = scmp.eq.s32.totalorder %s23, 1
      %p98 = por %p96, %p97
      %p100 = scmp.ne.s32.totalorder %s83, %s99
      %p101 = scmp.eq.s32.totalorder %s23, 0
      %p102 = por %p100, %p101
      %p103 = scmp.le.s32.totalorder 1, %s17
      %p104 = scmp.lt.s32.totalorder %s17, 3
      %p105 = pnand %p103, %p104
      %p106 = pneg %p105
      // Predicated region
      $region9: #{tpu_custom_call.1} parent=5 // pred_check
        _
      $region10: #{tpu_custom_call.1} parent=5 // pred_check_branch
        %108 = sbr.rel (%p105) target = $region12
      $region11: #{tpu_custom_call.1} parent=5 // pred_region
        %s109 = ssub.s32 %s17, 1
      $region12: #{tpu_custom_call.1} parent=5 // pred_fallthru
        _
      %p110 = scmp.lt.s32.totalorder %s17, 2
      // Predicated region
      $region13: #{tpu_custom_call.1} parent=5 // pred_check
        %p111 = pneg %p110
      $region14: #{tpu_custom_call.1} parent=5 // pred_check_branch
        %113 = sbr.rel (%p111) target = $region16
      $region15: #{tpu_custom_call.1} parent=5 // pred_region
        // Predicated region
        $region17: #{tpu_custom_call.1} parent=15 // pred_check
          %p114 = pneg %p37
        $region18: #{tpu_custom_call.1} parent=15 // pred_check_branch
          %116 = sbr.rel (%p114) target = $region20
        $region19: #{tpu_custom_call.1} parent=15 // pred_region
          %s117 = sand.u32 %s27, 1
          %s118 = scalar_lea.sflag [#allocation3], %s117
          %s119 = sand.u32 %s27, 1
          %s120 = smul.addr %s119, 2176
          %s121 = scalar_lea.vmem [#allocation2], %s120
          %s122 = smul.u32 4, %s17
          %124 = vsyncadd %s118, 0
          %s125 = smul.addr %s122, 68
          %s126 = smul.addr %s125, 8
          %s127 = scalar_lea.hbm %s0, %s126
          %s128 = sshll.u32 %s127, 4
          %s129 = int_to_ptr.hbm [resolvable:$true] %s128
          %s130 = sshll.u32 %s121, 4
          %s131 = int_to_ptr.vmem [resolvable:$true] %s130
          %136 = dma.hbm_to_vmem [thread:$0]  %s129, 34816, %s131, %s118, 128, 128, 8
        $region20: #{tpu_custom_call.1} parent=15 // pred_fallthru
          _
        // Predicated region
        $region21: #{tpu_custom_call.1} parent=15 // pred_check
          %p137 = pneg %p63
        $region22: #{tpu_custom_call.1} parent=15 // pred_check_branch
          %139 = sbr.rel (%p137) target = $region24
        $region23: #{tpu_custom_call.1} parent=15 // pred_region
          %s140 = sand.u32 %s53, 1
          %s141 = scalar_lea.sflag [#allocation6], %s140
          %s142 = sand.u32 %s53, 1
          %s143 = smul.addr %s142, 768
          %s144 = scalar_lea.vmem [#allocation5], %s143
          %s145 = smul.u32 4, %s17
          %147 = vsyncadd %s141, 0
          %s148 = smul.addr %s145, 24
          %s149 = smul.addr %s148, 8
          %s150 = scalar_lea.hbm %s1, %s149
          %s151 = sshll.u32 %s150, 4
          %s152 = int_to_ptr.hbm [resolvable:$true] %s151
          %s153 = sshll.u32 %s144, 4
          %s154 = int_to_ptr.vmem [resolvable:$true] %s153
          %159 = dma.hbm_to_vmem [thread:$0]  %s152, 12288, %s154, %s141, 128, 128, 8
        $region24: #{tpu_custom_call.1} parent=15 // pred_fallthru
          _
      $region16: #{tpu_custom_call.1} parent=5 // pred_fallthru
        _
      %p160 = scmp.le.s32.totalorder 1, %s17
      %p161 = scmp.lt.s32.totalorder %s17, 3
      %p162 = pnand %p160, %p161
      %p163 = pneg %p162
      // Predicated region
      $region25: #{tpu_custom_call.1} parent=5 // pred_check
        _
      $region26: #{tpu_custom_call.1} parent=5 // pred_check_branch
        %165 = sbr.rel (%p162) target = $region28
      $region27: #{tpu_custom_call.1} parent=5 // pred_region
        %s166 = ssub.s32 %s17, 1
        %s167 = sand.u32 %s30, 1
        %s168 = scalar_lea.sflag [#allocation3], %s167
        %s169 = sand.u32 %s30, 1
        %s170 = smul.addr %s169, 2176
        %s171 = scalar_lea.vmem [#allocation2], %s170
        // Predicated region
        $region29: #{tpu_custom_call.1} parent=27 // pred_check
          %p172 = pneg %p43
        $region30: #{tpu_custom_call.1} parent=27 // pred_check_branch
          %174 = sbr.rel (%p172) target = $region32
        $region31: #{tpu_custom_call.1} parent=27 // pred_region
          %176 = dma.done %s168, 34816
        $region32: #{tpu_custom_call.1} parent=27 // pred_fallthru
          _
        %s177 = sand.u32 %s56, 1
        %s178 = scalar_lea.sflag [#allocation6], %s177
        %s179 = sand.u32 %s56, 1
        %s180 = smul.addr %s179, 768
        %s181 = scalar_lea.vmem [#allocation5], %s180
        // Predicated region
        $region33: #{tpu_custom_call.1} parent=27 // pred_check
          %p182 = pneg %p69
        $region34: #{tpu_custom_call.1} parent=27 // pred_check_branch
          %184 = sbr.rel (%p182) target = $region36
        $region35: #{tpu_custom_call.1} parent=27 // pred_region
          %186 = dma.done %s178, 12288
        $region36: #{tpu_custom_call.1} parent=27 // pred_fallthru
          _
        %s187 = sand.u32 %s30, 1
        %s188 = scalar_lea.sflag [#allocation3], %s187
        %s189 = sand.u32 %s30, 1
        %s190 = smul.addr %s189, 2176
        %s191 = scalar_lea.vmem [#allocation2], %s190
        %p192 = pneg %p43
        %p193 = pneg %p40
        %s194 = sand.u32 %s56, 1
        %s195 = scalar_lea.sflag [#allocation6], %s194
        %s196 = sand.u32 %s56, 1
        %s197 = smul.addr %s196, 768
        %s198 = scalar_lea.vmem [#allocation5], %s197
        %p199 = pneg %p69
        %p200 = pneg %p66
        %p201 = pneg %p95
        %p202 = pneg %p92
        %s203 = sand.u32 %s82, 1
        %s204 = scalar_lea.sflag [#allocation4], %s203
        %s205 = sand.u32 %s82, 1
        %s206 = smul.addr %s205, 768
        %s207 = scalar_lea.vmem [#allocation7], %s206
        %s208 = smul.u32 4, %s22
        %s209 = smul.u32 4, %s22
        %s210 = smul.u32 4, %s22
        %s211 = scalar_lea.vmem %s171, 512 [#allocation2]
        %v212 = vld [vmem:[%s211] sm:$0xff]
        %v213 = vld [vmem:[%s211 + $0x8] sm:$0xff]
        %v214 = vld [vmem:[%s211 + $0x10] sm:$0xff]
        %v215 = vld [vmem:[%s211 + $0x18] sm:$0xff]
        %v216 = vld [vmem:[%s211 + $0x220] sm:$0xff]
        %v217 = vld [vmem:[%s211 + $0x228] sm:$0xff]
        %v218 = vld [vmem:[%s211 + $0x230] sm:$0xff]
        %v219 = vld [vmem:[%s211 + $0x238] sm:$0xff]
        %v220 = vld [vmem:[%s211 + $0x440] sm:$0xff]
        %v221 = vld [vmem:[%s211 + $0x448] sm:$0xff]
        %v222 = vld [vmem:[%s211 + $0x450] sm:$0xff]
        %v223 = vld [vmem:[%s211 + $0x458] sm:$0xff]
        %v224 = vld [vmem:[%s211 + $0x660] sm:$0xff]
        %v225 = vld [vmem:[%s211 + $0x668] sm:$0xff]
        %v226 = vld [vmem:[%s211 + $0x670] sm:$0xff]
        %v227 = vld [vmem:[%s211 + $0x678] sm:$0xff]
        %vm228 = vcmp.ne.f32.partialorder %v212, 0.0
        %vm229 = vcmp.ne.f32.partialorder %v213, 0.0
        %vm230 = vcmp.ne.f32.partialorder %v214, 0.0
        %vm231 = vcmp.ne.f32.partialorder %v215, 0.0
        %vm232 = vcmp.ne.f32.partialorder %v216, 0.0
        %vm233 = vcmp.ne.f32.partialorder %v217, 0.0
        %vm234 = vcmp.ne.f32.partialorder %v218, 0.0
        %vm235 = vcmp.ne.f32.partialorder %v219, 0.0
        %vm236 = vcmp.ne.f32.partialorder %v220, 0.0
        %vm237 = vcmp.ne.f32.partialorder %v221, 0.0
        %vm238 = vcmp.ne.f32.partialorder %v222, 0.0
        %vm239 = vcmp.ne.f32.partialorder %v223, 0.0
        %vm240 = vcmp.ne.f32.partialorder %v224, 0.0
        %vm241 = vcmp.ne.f32.partialorder %v225, 0.0
        %vm242 = vcmp.ne.f32.partialorder %v226, 0.0
        %vm243 = vcmp.ne.f32.partialorder %v227, 0.0
        %s244 = scalar_lea.vmem %s181, 64 [#allocation5]
        %v245 = vld [vmem:[%s244] sm:$0xff]
        %v246 = vld [vmem:[%s244 + $0x8] sm:$0xff]
        %v247 = vld [vmem:[%s244 + $0x10] sm:$0xff]
        %v248 = vld [vmem:[%s244 + $0x18] sm:$0xff]
        %v249 = vld [vmem:[%s244 + $0xc0] sm:$0xff]
        %v250 = vld [vmem:[%s244 + $0xc8] sm:$0xff]
        %v251 = vld [vmem:[%s244 + $0xd0] sm:$0xff]
        %v252 = vld [vmem:[%s244 + $0xd8] sm:$0xff]
        %v253 = vld [vmem:[%s244 + $0x180] sm:$0xff]
        %v254 = vld [vmem:[%s244 + $0x188] sm:$0xff]
        %v255 = vld [vmem:[%s244 + $0x190] sm:$0xff]
        %v256 = vld [vmem:[%s244 + $0x198] sm:$0xff]
        %v257 = vld [vmem:[%s244 + $0x240] sm:$0xff]
        %v258 = vld [vmem:[%s244 + $0x248] sm:$0xff]
        %v259 = vld [vmem:[%s244 + $0x250] sm:$0xff]
        %v260 = vld [vmem:[%s244 + $0x258] sm:$0xff]
        %v261 = vadd.f32 %v245, %v212
        %v262 = vadd.f32 %v246, %v213
        %v263 = vadd.f32 %v247, %v214
        %v264 = vadd.f32 %v248, %v215
        %v265 = vadd.f32 %v249, %v216
        %v266 = vadd.f32 %v250, %v217
        %v267 = vadd.f32 %v251, %v218
        %v268 = vadd.f32 %v252, %v219
        %v269 = vadd.f32 %v253, %v220
        %v270 = vadd.f32 %v254, %v221
        %v271 = vadd.f32 %v255, %v222
        %v272 = vadd.f32 %v256, %v223
        %v273 = vadd.f32 %v257, %v224
        %v274 = vadd.f32 %v258, %v225
        %v275 = vadd.f32 %v259, %v226
        %v276 = vadd.f32 %v260, %v227
        %s277 = scalar_lea.vmem %s207, 64 [#allocation7]
        %278 = vst [vmem:[%s277] sm:$0xff] %v261
        %279 = vst [vmem:[%s277 + $0x8] sm:$0xff] %v262
        %280 = vst [vmem:[%s277 + $0x10] sm:$0xff] %v263
        %281 = vst [vmem:[%s277 + $0x18] sm:$0xff] %v264
        %282 = vst [vmem:[%s277 + $0xc0] sm:$0xff] %v265
        %283 = vst [vmem:[%s277 + $0xc8] sm:$0xff] %v266
        %284 = vst [vmem:[%s277 + $0xd0] sm:$0xff] %v267
        %285 = vst [vmem:[%s277 + $0xd8] sm:$0xff] %v268
        %286 = vst [vmem:[%s277 + $0x180] sm:$0xff] %v269
        %287 = vst [vmem:[%s277 + $0x188] sm:$0xff] %v270
        %288 = vst [vmem:[%s277 + $0x190] sm:$0xff] %v271
        %289 = vst [vmem:[%s277 + $0x198] sm:$0xff] %v272
        %290 = vst [vmem:[%s277 + $0x240] sm:$0xff] %v273
        %291 = vst [vmem:[%s277 + $0x248] sm:$0xff] %v274
        %292 = vst [vmem:[%s277 + $0x250] sm:$0xff] %v275
        %293 = vst [vmem:[%s277 + $0x258] sm:$0xff] %v276
        %s294 = scalar_lea.vmem %s181, 96 [#allocation5]
        %v295 = vld [vmem:[%s294] sm:$0xff]
        %v296 = vld [vmem:[%s294 + $0x8] sm:$0xff]
        %v297 = vld [vmem:[%s294 + $0x10] sm:$0xff]
        %v298 = vld [vmem:[%s294 + $0x18] sm:$0xff]
        %v299 = vld [vmem:[%s294 + $0xc0] sm:$0xff]
        %v300 = vld [vmem:[%s294 + $0xc8] sm:$0xff]
        %v301 = vld [vmem:[%s294 + $0xd0] sm:$0xff]
        %v302 = vld [vmem:[%s294 + $0xd8] sm:$0xff]
        %v303 = vld [vmem:[%s294 + $0x180] sm:$0xff]
        %v304 = vld [vmem:[%s294 + $0x188] sm:$0xff]
        %v305 = vld [vmem:[%s294 + $0x190] sm:$0xff]
        %v306 = vld [vmem:[%s294 + $0x198] sm:$0xff]
        %v307 = vld [vmem:[%s294 + $0x240] sm:$0xff]
        %v308 = vld [vmem:[%s294 + $0x248] sm:$0xff]
        %v309 = vld [vmem:[%s294 + $0x250] sm:$0xff]
        %v310 = vld [vmem:[%s294 + $0x258] sm:$0xff]
        %v311 = vadd.f32 %v295, %v212
        %v312 = vadd.f32 %v296, %v213
        %v313 = vadd.f32 %v297, %v214
        %v314 = vadd.f32 %v298, %v215
        %v315 = vadd.f32 %v299, %v216
        %v316 = vadd.f32 %v300, %v217
        %v317 = vadd.f32 %v301, %v218
        %v318 = vadd.f32 %v302, %v219
        %v319 = vadd.f32 %v303, %v220
        %v320 = vadd.f32 %v304, %v221
        %v321 = vadd.f32 %v305, %v222
        %v322 = vadd.f32 %v306, %v223
        %v323 = vadd.f32 %v307, %v224
        %v324 = vadd.f32 %v308, %v225
        %v325 = vadd.f32 %v309, %v226
        %v326 = vadd.f32 %v310, %v227
        %v327 = vmin.f32 %v311, 1000.0
        %v328 = vmin.f32 %v312, 1000.0
        %v329 = vmin.f32 %v313, 1000.0
        %v330 = vmin.f32 %v314, 1000.0
        %v331 = vmin.f32 %v315, 1000.0
        %v332 = vmin.f32 %v316, 1000.0
        %v333 = vmin.f32 %v317, 1000.0
        %v334 = vmin.f32 %v318, 1000.0
        %v335 = vmin.f32 %v319, 1000.0
        %v336 = vmin.f32 %v320, 1000.0
        %v337 = vmin.f32 %v321, 1000.0
        %v338 = vmin.f32 %v322, 1000.0
        %v339 = vmin.f32 %v323, 1000.0
        %v340 = vmin.f32 %v324, 1000.0
        %v341 = vmin.f32 %v325, 1000.0
        %v342 = vmin.f32 %v326, 1000.0
        %s343 = scalar_lea.vmem %s207, 96 [#allocation7]
        %344 = vst [vmem:[%s343] sm:$0xff] %v327
        %345 = vst [vmem:[%s343 + $0x8] sm:$0xff] %v328
        %346 = vst [vmem:[%s343 + $0x10] sm:$0xff] %v329
        %347 = vst [vmem:[%s343 + $0x18] sm:$0xff] %v330
        %348 = vst [vmem:[%s343 + $0xc0] sm:$0xff] %v331
        %349 = vst [vmem:[%s343 + $0xc8] sm:$0xff] %v332
        %350 = vst [vmem:[%s343 + $0xd0] sm:$0xff] %v333
        %351 = vst [vmem:[%s343 + $0xd8] sm:$0xff] %v334
        %352 = vst [vmem:[%s343 + $0x180] sm:$0xff] %v335
        %353 = vst [vmem:[%s343 + $0x188] sm:$0xff] %v336
        %354 = vst [vmem:[%s343 + $0x190] sm:$0xff] %v337
        %355 = vst [vmem:[%s343 + $0x198] sm:$0xff] %v338
        %356 = vst [vmem:[%s343 + $0x240] sm:$0xff] %v339
        %357 = vst [vmem:[%s343 + $0x248] sm:$0xff] %v340
        %358 = vst [vmem:[%s343 + $0x250] sm:$0xff] %v341
        %359 = vst [vmem:[%s343 + $0x258] sm:$0xff] %v342
        %v360 = vld [vmem:[%s171] sm:$0xff]
        %v361 = vld [vmem:[%s171 + $0x8] sm:$0xff]
        %v362 = vld [vmem:[%s171 + $0x10] sm:$0xff]
        %v363 = vld [vmem:[%s171 + $0x18] sm:$0xff]
        %v364 = vld [vmem:[%s171 + $0x220] sm:$0xff]
        %v365 = vld [vmem:[%s171 + $0x228] sm:$0xff]
        %v366 = vld [vmem:[%s171 + $0x230] sm:$0xff]
        %v367 = vld [vmem:[%s171 + $0x238] sm:$0xff]
        %v368 = vld [vmem:[%s171 + $0x440] sm:$0xff]
        %v369 = vld [vmem:[%s171 + $0x448] sm:$0xff]
        %v370 = vld [vmem:[%s171 + $0x450] sm:$0xff]
        %v371 = vld [vmem:[%s171 + $0x458] sm:$0xff]
        %v372 = vld [vmem:[%s171 + $0x660] sm:$0xff]
        %v373 = vld [vmem:[%s171 + $0x668] sm:$0xff]
        %v374 = vld [vmem:[%s171 + $0x670] sm:$0xff]
        %v375 = vld [vmem:[%s171 + $0x678] sm:$0xff]
        %v376 = vadd.f32 %v360, 0.0
        %v377 = vadd.f32 %v361, 0.0
        %v378 = vadd.f32 %v362, 0.0
        %v379 = vadd.f32 %v363, 0.0
        %v380 = vadd.f32 %v364, 0.0
        %v381 = vadd.f32 %v365, 0.0
        %v382 = vadd.f32 %v366, 0.0
        %v383 = vadd.f32 %v367, 0.0
        %v384 = vadd.f32 %v368, 0.0
        %v385 = vadd.f32 %v369, 0.0
        %v386 = vadd.f32 %v370, 0.0
        %v387 = vadd.f32 %v371, 0.0
        %v388 = vadd.f32 %v372, 0.0
        %v389 = vadd.f32 %v373, 0.0
        %v390 = vadd.f32 %v374, 0.0
        %v391 = vadd.f32 %v375, 0.0
        %v392 = vmul.f32 %v360, %v360
        %v393 = vmul.f32 %v361, %v361
        %v394 = vmul.f32 %v362, %v362
        %v395 = vmul.f32 %v363, %v363
        %v396 = vmul.f32 %v364, %v364
        %v397 = vmul.f32 %v365, %v365
        %v398 = vmul.f32 %v366, %v366
        %v399 = vmul.f32 %v367, %v367
        %v400 = vmul.f32 %v368, %v368
        %v401 = vmul.f32 %v369, %v369
        %v402 = vmul.f32 %v370, %v370
        %v403 = vmul.f32 %v371, %v371
        %v404 = vmul.f32 %v372, %v372
        %v405 = vmul.f32 %v373, %v373
        %v406 = vmul.f32 %v374, %v374
        %v407 = vmul.f32 %v375, %v375
        %v408 = vadd.f32 %v392, 0.0
        %v409 = vadd.f32 %v393, 0.0
        %v410 = vadd.f32 %v394, 0.0
        %v411 = vadd.f32 %v395, 0.0
        %v412 = vadd.f32 %v396, 0.0
        %v413 = vadd.f32 %v397, 0.0
        %v414 = vadd.f32 %v398, 0.0
        %v415 = vadd.f32 %v399, 0.0
        %v416 = vadd.f32 %v400, 0.0
        %v417 = vadd.f32 %v401, 0.0
        %v418 = vadd.f32 %v402, 0.0
        %v419 = vadd.f32 %v403, 0.0
        %v420 = vadd.f32 %v404, 0.0
        %v421 = vadd.f32 %v405, 0.0
        %v422 = vadd.f32 %v406, 0.0
        %v423 = vadd.f32 %v407, 0.0
        %s424 = scalar_lea.vmem %s171, 32 [#allocation2]
        %v425 = vld [vmem:[%s424] sm:$0xff]
        %v426 = vld [vmem:[%s424 + $0x8] sm:$0xff]
        %v427 = vld [vmem:[%s424 + $0x10] sm:$0xff]
        %v428 = vld [vmem:[%s424 + $0x18] sm:$0xff]
        %v429 = vld [vmem:[%s424 + $0x220] sm:$0xff]
        %v430 = vld [vmem:[%s424 + $0x228] sm:$0xff]
        %v431 = vld [vmem:[%s424 + $0x230] sm:$0xff]
        %v432 = vld [vmem:[%s424 + $0x238] sm:$0xff]
        %v433 = vld [vmem:[%s424 + $0x440] sm:$0xff]
        %v434 = vld [vmem:[%s424 + $0x448] sm:$0xff]
        %v435 = vld [vmem:[%s424 + $0x450] sm:$0xff]
        %v436 = vld [vmem:[%s424 + $0x458] sm:$0xff]
        %v437 = vld [vmem:[%s424 + $0x660] sm:$0xff]
        %v438 = vld [vmem:[%s424 + $0x668] sm:$0xff]
        %v439 = vld [vmem:[%s424 + $0x670] sm:$0xff]
        %v440 = vld [vmem:[%s424 + $0x678] sm:$0xff]
        %v441 = vadd.f32 %v376, %v425
        %v442 = vadd.f32 %v377, %v426
        %v443 = vadd.f32 %v378, %v427
        %v444 = vadd.f32 %v379, %v428
        %v445 = vadd.f32 %v380, %v429
        %v446 = vadd.f32 %v381, %v430
        %v447 = vadd.f32 %v382, %v431
        %v448 = vadd.f32 %v383, %v432
        %v449 = vadd.f32 %v384, %v433
        %v450 = vadd.f32 %v385, %v434
        %v451 = vadd.f32 %v386, %v435
        %v452 = vadd.f32 %v387, %v436
        %v453 = vadd.f32 %v388, %v437
        %v454 = vadd.f32 %v389, %v438
        %v455 = vadd.f32 %v390, %v439
        %v456 = vadd.f32 %v391, %v440
        %v457 = vmul.f32 %v425, %v425
        %v458 = vmul.f32 %v426, %v426
        %v459 = vmul.f32 %v427, %v427
        %v460 = vmul.f32 %v428, %v428
        %v461 = vmul.f32 %v429, %v429
        %v462 = vmul.f32 %v430, %v430
        %v463 = vmul.f32 %v431, %v431
        %v464 = vmul.f32 %v432, %v432
        %v465 = vmul.f32 %v433, %v433
        %v466 = vmul.f32 %v434, %v434
        %v467 = vmul.f32 %v435, %v435
        %v468 = vmul.f32 %v436, %v436
        %v469 = vmul.f32 %v437, %v437
        %v470 = vmul.f32 %v438, %v438
        %v471 = vmul.f32 %v439, %v439
        %v472 = vmul.f32 %v440, %v440
        %v473 = vadd.f32 %v408, %v457
        %v474 = vadd.f32 %v409, %v458
        %v475 = vadd.f32 %v410, %v459
        %v476 = vadd.f32 %v411, %v460
        %v477 = vadd.f32 %v412, %v461
        %v478 = vadd.f32 %v413, %v462
        %v479 = vadd.f32 %v414, %v463
        %v480 = vadd.f32 %v415, %v464
        %v481 = vadd.f32 %v416, %v465
        %v482 = vadd.f32 %v417, %v466
        %v483 = vadd.f32 %v418, %v467
        %v484 = vadd.f32 %v419, %v468
        %v485 = vadd.f32 %v420, %v469
        %v486 = vadd.f32 %v421, %v470
        %v487 = vadd.f32 %v422, %v471
        %v488 = vadd.f32 %v423, %v472
        %s489 = scalar_lea.vmem %s171, 64 [#allocation2]
        %v490 = vld [vmem:[%s489] sm:$0xff]
        %v491 = vld [vmem:[%s489 + $0x8] sm:$0xff]
        %v492 = vld [vmem:[%s489 + $0x10] sm:$0xff]
        %v493 = vld [vmem:[%s489 + $0x18] sm:$0xff]
        %v494 = vld [vmem:[%s489 + $0x220] sm:$0xff]
        %v495 = vld [vmem:[%s489 + $0x228] sm:$0xff]
        %v496 = vld [vmem:[%s489 + $0x230] sm:$0xff]
        %v497 = vld [vmem:[%s489 + $0x238] sm:$0xff]
        %v498 = vld [vmem:[%s489 + $0x440] sm:$0xff]
        %v499 = vld [vmem:[%s489 + $0x448] sm:$0xff]
        %v500 = vld [vmem:[%s489 + $0x450] sm:$0xff]
        %v501 = vld [vmem:[%s489 + $0x458] sm:$0xff]
        %v502 = vld [vmem:[%s489 + $0x660] sm:$0xff]
        %v503 = vld [vmem:[%s489 + $0x668] sm:$0xff]
        %v504 = vld [vmem:[%s489 + $0x670] sm:$0xff]
        %v505 = vld [vmem:[%s489 + $0x678] sm:$0xff]
        %v506 = vadd.f32 %v441, %v490
        %v507 = vadd.f32 %v442, %v491
        %v508 = vadd.f32 %v443, %v492
        %v509 = vadd.f32 %v444, %v493
        %v510 = vadd.f32 %v445, %v494
        %v511 = vadd.f32 %v446, %v495
        %v512 = vadd.f32 %v447, %v496
        %v513 = vadd.f32 %v448, %v497
        %v514 = vadd.f32 %v449, %v498
        %v515 = vadd.f32 %v450, %v499
        %v516 = vadd.f32 %v451, %v500
        %v517 = vadd.f32 %v452, %v501
        %v518 = vadd.f32 %v453, %v502
        %v519 = vadd.f32 %v454, %v503
        %v520 = vadd.f32 %v455, %v504
        %v521 = vadd.f32 %v456, %v505
        %v522 = vmul.f32 %v490, %v490
        %v523 = vmul.f32 %v491, %v491
        %v524 = vmul.f32 %v492, %v492
        %v525 = vmul.f32 %v493, %v493
        %v526 = vmul.f32 %v494, %v494
        %v527 = vmul.f32 %v495, %v495
        %v528 = vmul.f32 %v496, %v496
        %v529 = vmul.f32 %v497, %v497
        %v530 = vmul.f32 %v498, %v498
        %v531 = vmul.f32 %v499, %v499
        %v532 = vmul.f32 %v500, %v500
        %v533 = vmul.f32 %v501, %v501
        %v534 = vmul.f32 %v502, %v502
        %v535 = vmul.f32 %v503, %v503
        %v536 = vmul.f32 %v504, %v504
        %v537 = vmul.f32 %v505, %v505
        %v538 = vadd.f32 %v473, %v522
        %v539 = vadd.f32 %v474, %v523
        %v540 = vadd.f32 %v475, %v524
        %v541 = vadd.f32 %v476, %v525
        %v542 = vadd.f32 %v477, %v526
        %v543 = vadd.f32 %v478, %v527
        %v544 = vadd.f32 %v479, %v528
        %v545 = vadd.f32 %v480, %v529
        %v546 = vadd.f32 %v481, %v530
        %v547 = vadd.f32 %v482, %v531
        %v548 = vadd.f32 %v483, %v532
        %v549 = vadd.f32 %v484, %v533
        %v550 = vadd.f32 %v485, %v534
        %v551 = vadd.f32 %v486, %v535
        %v552 = vadd.f32 %v487, %v536
        %v553 = vadd.f32 %v488, %v537
        %s554 = scalar_lea.vmem %s171, 96 [#allocation2]
        %v555 = vld [vmem:[%s554] sm:$0xff]
        %v556 = vld [vmem:[%s554 + $0x8] sm:$0xff]
        %v557 = vld [vmem:[%s554 + $0x10] sm:$0xff]
        %v558 = vld [vmem:[%s554 + $0x18] sm:$0xff]
        %v559 = vld [vmem:[%s554 + $0x220] sm:$0xff]
        %v560 = vld [vmem:[%s554 + $0x228] sm:$0xff]
        %v561 = vld [vmem:[%s554 + $0x230] sm:$0xff]
        %v562 = vld [vmem:[%s554 + $0x238] sm:$0xff]
        %v563 = vld [vmem:[%s554 + $0x440] sm:$0xff]
        %v564 = vld [vmem:[%s554 + $0x448] sm:$0xff]
        %v565 = vld [vmem:[%s554 + $0x450] sm:$0xff]
        %v566 = vld [vmem:[%s554 + $0x458] sm:$0xff]
        %v567 = vld [vmem:[%s554 + $0x660] sm:$0xff]
        %v568 = vld [vmem:[%s554 + $0x668] sm:$0xff]
        %v569 = vld [vmem:[%s554 + $0x670] sm:$0xff]
        %v570 = vld [vmem:[%s554 + $0x678] sm:$0xff]
        %v571 = vadd.f32 %v506, %v555
        %v572 = vadd.f32 %v507, %v556
        %v573 = vadd.f32 %v508, %v557
        %v574 = vadd.f32 %v509, %v558
        %v575 = vadd.f32 %v510, %v559
        %v576 = vadd.f32 %v511, %v560
        %v577 = vadd.f32 %v512, %v561
        %v578 = vadd.f32 %v513, %v562
        %v579 = vadd.f32 %v514, %v563
        %v580 = vadd.f32 %v515, %v564
        %v581 = vadd.f32 %v516, %v565
        %v582 = vadd.f32 %v517, %v566
        %v583 = vadd.f32 %v518, %v567
        %v584 = vadd.f32 %v519, %v568
        %v585 = vadd.f32 %v520, %v569
        %v586 = vadd.f32 %v521, %v570
        %v587 = vmul.f32 %v555, %v555
        %v588 = vmul.f32 %v556, %v556
        %v589 = vmul.f32 %v557, %v557
        %v590 = vmul.f32 %v558, %v558
        %v591 = vmul.f32 %v559, %v559
        %v592 = vmul.f32 %v560, %v560
        %v593 = vmul.f32 %v561, %v561
        %v594 = vmul.f32 %v562, %v562
        %v595 = vmul.f32 %v563, %v563
        %v596 = vmul.f32 %v564, %v564
        %v597 = vmul.f32 %v565, %v565
        %v598 = vmul.f32 %v566, %v566
        %v599 = vmul.f32 %v567, %v567
        %v600 = vmul.f32 %v568, %v568
        %v601 = vmul.f32 %v569, %v569
        %v602 = vmul.f32 %v570, %v570
        %v603 = vadd.f32 %v538, %v587
        %v604 = vadd.f32 %v539, %v588
        %v605 = vadd.f32 %v540, %v589
        %v606 = vadd.f32 %v541, %v590
        %v607 = vadd.f32 %v542, %v591
        %v608 = vadd.f32 %v543, %v592
        %v609 = vadd.f32 %v544, %v593
        %v610 = vadd.f32 %v545, %v594
        %v611 = vadd.f32 %v546, %v595
        %v612 = vadd.f32 %v547, %v596
        %v613 = vadd.f32 %v548, %v597
        %v614 = vadd.f32 %v549, %v598
        %v615 = vadd.f32 %v550, %v599
        %v616 = vadd.f32 %v551, %v600
        %v617 = vadd.f32 %v552, %v601
        %v618 = vadd.f32 %v553, %v602
        %s619 = scalar_lea.vmem %s171, 128 [#allocation2]
        %v620 = vld [vmem:[%s619] sm:$0xff]
        %v621 = vld [vmem:[%s619 + $0x8] sm:$0xff]
        %v622 = vld [vmem:[%s619 + $0x10] sm:$0xff]
        %v623 = vld [vmem:[%s619 + $0x18] sm:$0xff]
        %v624 = vld [vmem:[%s619 + $0x220] sm:$0xff]
        %v625 = vld [vmem:[%s619 + $0x228] sm:$0xff]
        %v626 = vld [vmem:[%s619 + $0x230] sm:$0xff]
        %v627 = vld [vmem:[%s619 + $0x238] sm:$0xff]
        %v628 = vld [vmem:[%s619 + $0x440] sm:$0xff]
        %v629 = vld [vmem:[%s619 + $0x448] sm:$0xff]
        %v630 = vld [vmem:[%s619 + $0x450] sm:$0xff]
        %v631 = vld [vmem:[%s619 + $0x458] sm:$0xff]
        %v632 = vld [vmem:[%s619 + $0x660] sm:$0xff]
        %v633 = vld [vmem:[%s619 + $0x668] sm:$0xff]
        %v634 = vld [vmem:[%s619 + $0x670] sm:$0xff]
        %v635 = vld [vmem:[%s619 + $0x678] sm:$0xff]
        %v636 = vadd.f32 %v571, %v620
        %v637 = vadd.f32 %v572, %v621
        %v638 = vadd.f32 %v573, %v622
        %v639 = vadd.f32 %v574, %v623
        %v640 = vadd.f32 %v575, %v624
        %v641 = vadd.f32 %v576, %v625
        %v642 = vadd.f32 %v577, %v626
        %v643 = vadd.f32 %v578, %v627
        %v644 = vadd.f32 %v579, %v628
        %v645 = vadd.f32 %v580, %v629
        %v646 = vadd.f32 %v581, %v630
        %v647 = vadd.f32 %v582, %v631
        %v648 = vadd.f32 %v583, %v632
        %v649 = vadd.f32 %v584, %v633
        %v650 = vadd.f32 %v585, %v634
        %v651 = vadd.f32 %v586, %v635
        %v652 = vmul.f32 %v620, %v620
        %v653 = vmul.f32 %v621, %v621
        %v654 = vmul.f32 %v622, %v622
        %v655 = vmul.f32 %v623, %v623
        %v656 = vmul.f32 %v624, %v624
        %v657 = vmul.f32 %v625, %v625
        %v658 = vmul.f32 %v626, %v626
        %v659 = vmul.f32 %v627, %v627
        %v660 = vmul.f32 %v628, %v628
        %v661 = vmul.f32 %v629, %v629
        %v662 = vmul.f32 %v630, %v630
        %v663 = vmul.f32 %v631, %v631
        %v664 = vmul.f32 %v632, %v632
        %v665 = vmul.f32 %v633, %v633
        %v666 = vmul.f32 %v634, %v634
        %v667 = vmul.f32 %v635, %v635
        %v668 = vadd.f32 %v603, %v652
        %v669 = vadd.f32 %v604, %v653
        %v670 = vadd.f32 %v605, %v654
        %v671 = vadd.f32 %v606, %v655
        %v672 = vadd.f32 %v607, %v656
        %v673 = vadd.f32 %v608, %v657
        %v674 = vadd.f32 %v609, %v658
        %v675 = vadd.f32 %v610, %v659
        %v676 = vadd.f32 %v611, %v660
        %v677 = vadd.f32 %v612, %v661
        %v678 = vadd.f32 %v613, %v662
        %v679 = vadd.f32 %v614, %v663
        %v680 = vadd.f32 %v615, %v664
        %v681 = vadd.f32 %v616, %v665
        %v682 = vadd.f32 %v617, %v666
        %v683 = vadd.f32 %v618, %v667
        %s684 = scalar_lea.vmem %s171, 160 [#allocation2]
        %v685 = vld [vmem:[%s684] sm:$0xff]
        %v686 = vld [vmem:[%s684 + $0x8] sm:$0xff]
        %v687 = vld [vmem:[%s684 + $0x10] sm:$0xff]
        %v688 = vld [vmem:[%s684 + $0x18] sm:$0xff]
        %v689 = vld [vmem:[%s684 + $0x220] sm:$0xff]
        %v690 = vld [vmem:[%s684 + $0x228] sm:$0xff]
        %v691 = vld [vmem:[%s684 + $0x230] sm:$0xff]
        %v692 = vld [vmem:[%s684 + $0x238] sm:$0xff]
        %v693 = vld [vmem:[%s684 + $0x440] sm:$0xff]
        %v694 = vld [vmem:[%s684 + $0x448] sm:$0xff]
        %v695 = vld [vmem:[%s684 + $0x450] sm:$0xff]
        %v696 = vld [vmem:[%s684 + $0x458] sm:$0xff]
        %v697 = vld [vmem:[%s684 + $0x660] sm:$0xff]
        %v698 = vld [vmem:[%s684 + $0x668] sm:$0xff]
        %v699 = vld [vmem:[%s684 + $0x670] sm:$0xff]
        %v700 = vld [vmem:[%s684 + $0x678] sm:$0xff]
        %v701 = vadd.f32 %v636, %v685
        %v702 = vadd.f32 %v637, %v686
        %v703 = vadd.f32 %v638, %v687
        %v704 = vadd.f32 %v639, %v688
        %v705 = vadd.f32 %v640, %v689
        %v706 = vadd.f32 %v641, %v690
        %v707 = vadd.f32 %v642, %v691
        %v708 = vadd.f32 %v643, %v692
        %v709 = vadd.f32 %v644, %v693
        %v710 = vadd.f32 %v645, %v694
        %v711 = vadd.f32 %v646, %v695
        %v712 = vadd.f32 %v647, %v696
        %v713 = vadd.f32 %v648, %v697
        %v714 = vadd.f32 %v649, %v698
        %v715 = vadd.f32 %v650, %v699
        %v716 = vadd.f32 %v651, %v700
        %v717 = vmul.f32 %v685, %v685
        %v718 = vmul.f32 %v686, %v686
        %v719 = vmul.f32 %v687, %v687
        %v720 = vmul.f32 %v688, %v688
        %v721 = vmul.f32 %v689, %v689
        %v722 = vmul.f32 %v690, %v690
        %v723 = vmul.f32 %v691, %v691
        %v724 = vmul.f32 %v692, %v692
        %v725 = vmul.f32 %v693, %v693
        %v726 = vmul.f32 %v694, %v694
        %v727 = vmul.f32 %v695, %v695
        %v728 = vmul.f32 %v696, %v696
        %v729 = vmul.f32 %v697, %v697
        %v730 = vmul.f32 %v698, %v698
        %v731 = vmul.f32 %v699, %v699
        %v732 = vmul.f32 %v700, %v700
        %v733 = vadd.f32 %v668, %v717
        %v734 = vadd.f32 %v669, %v718
        %v735 = vadd.f32 %v670, %v719
        %v736 = vadd.f32 %v671, %v720
        %v737 = vadd.f32 %v672, %v721
        %v738 = vadd.f32 %v673, %v722
        %v739 = vadd.f32 %v674, %v723
        %v740 = vadd.f32 %v675, %v724
        %v741 = vadd.f32 %v676, %v725
        %v742 = vadd.f32 %v677, %v726
        %v743 = vadd.f32 %v678, %v727
        %v744 = vadd.f32 %v679, %v728
        %v745 = vadd.f32 %v680, %v729
        %v746 = vadd.f32 %v681, %v730
        %v747 = vadd.f32 %v682, %v731
        %v748 = vadd.f32 %v683, %v732
        %s749 = scalar_lea.vmem %s171, 192 [#allocation2]
        %v750 = vld [vmem:[%s749] sm:$0xff]
        %v751 = vld [vmem:[%s749 + $0x8] sm:$0xff]
        %v752 = vld [vmem:[%s749 + $0x10] sm:$0xff]
        %v753 = vld [vmem:[%s749 + $0x18] sm:$0xff]
        %v754 = vld [vmem:[%s749 + $0x220] sm:$0xff]
        %v755 = vld [vmem:[%s749 + $0x228] sm:$0xff]
        %v756 = vld [vmem:[%s749 + $0x230] sm:$0xff]
        %v757 = vld [vmem:[%s749 + $0x238] sm:$0xff]
        %v758 = vld [vmem:[%s749 + $0x440] sm:$0xff]
        %v759 = vld [vmem:[%s749 + $0x448] sm:$0xff]
        %v760 = vld [vmem:[%s749 + $0x450] sm:$0xff]
        %v761 = vld [vmem:[%s749 + $0x458] sm:$0xff]
        %v762 = vld [vmem:[%s749 + $0x660] sm:$0xff]
        %v763 = vld [vmem:[%s749 + $0x668] sm:$0xff]
        %v764 = vld [vmem:[%s749 + $0x670] sm:$0xff]
        %v765 = vld [vmem:[%s749 + $0x678] sm:$0xff]
        %v766 = vadd.f32 %v701, %v750
        %v767 = vadd.f32 %v702, %v751
        %v768 = vadd.f32 %v703, %v752
        %v769 = vadd.f32 %v704, %v753
        %v770 = vadd.f32 %v705, %v754
        %v771 = vadd.f32 %v706, %v755
        %v772 = vadd.f32 %v707, %v756
        %v773 = vadd.f32 %v708, %v757
        %v774 = vadd.f32 %v709, %v758
        %v775 = vadd.f32 %v710, %v759
        %v776 = vadd.f32 %v711, %v760
        %v777 = vadd.f32 %v712, %v761
        %v778 = vadd.f32 %v713, %v762
        %v779 = vadd.f32 %v714, %v763
        %v780 = vadd.f32 %v715, %v764
        %v781 = vadd.f32 %v716, %v765
        %v782 = vmul.f32 %v750, %v750
        %v783 = vmul.f32 %v751, %v751
        %v784 = vmul.f32 %v752, %v752
        %v785 = vmul.f32 %v753, %v753
        %v786 = vmul.f32 %v754, %v754
        %v787 = vmul.f32 %v755, %v755
        %v788 = vmul.f32 %v756, %v756
        %v789 = vmul.f32 %v757, %v757
        %v790 = vmul.f32 %v758, %v758
        %v791 = vmul.f32 %v759, %v759
        %v792 = vmul.f32 %v760, %v760
        %v793 = vmul.f32 %v761, %v761
        %v794 = vmul.f32 %v762, %v762
        %v795 = vmul.f32 %v763, %v763
        %v796 = vmul.f32 %v764, %v764
        %v797 = vmul.f32 %v765, %v765
        %v798 = vadd.f32 %v733, %v782
        %v799 = vadd.f32 %v734, %v783
        %v800 = vadd.f32 %v735, %v784
        %v801 = vadd.f32 %v736, %v785
        %v802 = vadd.f32 %v737, %v786
        %v803 = vadd.f32 %v738, %v787
        %v804 = vadd.f32 %v739, %v788
        %v805 = vadd.f32 %v740, %v789
        %v806 = vadd.f32 %v741, %v790
        %v807 = vadd.f32 %v742, %v791
        %v808 = vadd.f32 %v743, %v792
        %v809 = vadd.f32 %v744, %v793
        %v810 = vadd.f32 %v745, %v794
        %v811 = vadd.f32 %v746, %v795
        %v812 = vadd.f32 %v747, %v796
        %v813 = vadd.f32 %v748, %v797
        %s814 = scalar_lea.vmem %s171, 224 [#allocation2]
        %v815 = vld [vmem:[%s814] sm:$0xff]
        %v816 = vld [vmem:[%s814 + $0x8] sm:$0xff]
        %v817 = vld [vmem:[%s814 + $0x10] sm:$0xff]
        %v818 = vld [vmem:[%s814 + $0x18] sm:$0xff]
        %v819 = vld [vmem:[%s814 + $0x220] sm:$0xff]
        %v820 = vld [vmem:[%s814 + $0x228] sm:$0xff]
        %v821 = vld [vmem:[%s814 + $0x230] sm:$0xff]
        %v822 = vld [vmem:[%s814 + $0x238] sm:$0xff]
        %v823 = vld [vmem:[%s814 + $0x440] sm:$0xff]
        %v824 = vld [vmem:[%s814 + $0x448] sm:$0xff]
        %v825 = vld [vmem:[%s814 + $0x450] sm:$0xff]
        %v826 = vld [vmem:[%s814 + $0x458] sm:$0xff]
        %v827 = vld [vmem:[%s814 + $0x660] sm:$0xff]
        %v828 = vld [vmem:[%s814 + $0x668] sm:$0xff]
        %v829 = vld [vmem:[%s814 + $0x670] sm:$0xff]
        %v830 = vld [vmem:[%s814 + $0x678] sm:$0xff]
        %v831 = vadd.f32 %v766, %v815
        %v832 = vadd.f32 %v767, %v816
        %v833 = vadd.f32 %v768, %v817
        %v834 = vadd.f32 %v769, %v818
        %v835 = vadd.f32 %v770, %v819
        %v836 = vadd.f32 %v771, %v820
        %v837 = vadd.f32 %v772, %v821
        %v838 = vadd.f32 %v773, %v822
        %v839 = vadd.f32 %v774, %v823
        %v840 = vadd.f32 %v775, %v824
        %v841 = vadd.f32 %v776, %v825
        %v842 = vadd.f32 %v777, %v826
        %v843 = vadd.f32 %v778, %v827
        %v844 = vadd.f32 %v779, %v828
        %v845 = vadd.f32 %v780, %v829
        %v846 = vadd.f32 %v781, %v830
        %v847 = vmul.f32 %v815, %v815
        %v848 = vmul.f32 %v816, %v816
        %v849 = vmul.f32 %v817, %v817
        %v850 = vmul.f32 %v818, %v818
        %v851 = vmul.f32 %v819, %v819
        %v852 = vmul.f32 %v820, %v820
        %v853 = vmul.f32 %v821, %v821
        %v854 = vmul.f32 %v822, %v822
        %v855 = vmul.f32 %v823, %v823
        %v856 = vmul.f32 %v824, %v824
        %v857 = vmul.f32 %v825, %v825
        %v858 = vmul.f32 %v826, %v826
        %v859 = vmul.f32 %v827, %v827
        %v860 = vmul.f32 %v828, %v828
        %v861 = vmul.f32 %v829, %v829
        %v862 = vmul.f32 %v830, %v830
        %v863 = vadd.f32 %v798, %v847
        %v864 = vadd.f32 %v799, %v848
        %v865 = vadd.f32 %v800, %v849
        %v866 = vadd.f32 %v801, %v850
        %v867 = vadd.f32 %v802, %v851
        %v868 = vadd.f32 %v803, %v852
        %v869 = vadd.f32 %v804, %v853
        %v870 = vadd.f32 %v805, %v854
        %v871 = vadd.f32 %v806, %v855
        %v872 = vadd.f32 %v807, %v856
        %v873 = vadd.f32 %v808, %v857
        %v874 = vadd.f32 %v809, %v858
        %v875 = vadd.f32 %v810, %v859
        %v876 = vadd.f32 %v811, %v860
        %v877 = vadd.f32 %v812, %v861
        %v878 = vadd.f32 %v813, %v862
        %s879 = scalar_lea.vmem %s171, 256 [#allocation2]
        %v880 = vld [vmem:[%s879] sm:$0xff]
        %v881 = vld [vmem:[%s879 + $0x8] sm:$0xff]
        %v882 = vld [vmem:[%s879 + $0x10] sm:$0xff]
        %v883 = vld [vmem:[%s879 + $0x18] sm:$0xff]
        %v884 = vld [vmem:[%s879 + $0x220] sm:$0xff]
        %v885 = vld [vmem:[%s879 + $0x228] sm:$0xff]
        %v886 = vld [vmem:[%s879 + $0x230] sm:$0xff]
        %v887 = vld [vmem:[%s879 + $0x238] sm:$0xff]
        %v888 = vld [vmem:[%s879 + $0x440] sm:$0xff]
        %v889 = vld [vmem:[%s879 + $0x448] sm:$0xff]
        %v890 = vld [vmem:[%s879 + $0x450] sm:$0xff]
        %v891 = vld [vmem:[%s879 + $0x458] sm:$0xff]
        %v892 = vld [vmem:[%s879 + $0x660] sm:$0xff]
        %v893 = vld [vmem:[%s879 + $0x668] sm:$0xff]
        %v894 = vld [vmem:[%s879 + $0x670] sm:$0xff]
        %v895 = vld [vmem:[%s879 + $0x678] sm:$0xff]
        %v896 = vadd.f32 %v831, %v880
        %v897 = vadd.f32 %v832, %v881
        %v898 = vadd.f32 %v833, %v882
        %v899 = vadd.f32 %v834, %v883
        %v900 = vadd.f32 %v835, %v884
        %v901 = vadd.f32 %v836, %v885
        %v902 = vadd.f32 %v837, %v886
        %v903 = vadd.f32 %v838, %v887
        %v904 = vadd.f32 %v839, %v888
        %v905 = vadd.f32 %v840, %v889
        %v906 = vadd.f32 %v841, %v890
        %v907 = vadd.f32 %v842, %v891
        %v908 = vadd.f32 %v843, %v892
        %v909 = vadd.f32 %v844, %v893
        %v910 = vadd.f32 %v845, %v894
        %v911 = vadd.f32 %v846, %v895
        %v912 = vmul.f32 %v880, %v880
        %v913 = vmul.f32 %v881, %v881
        %v914 = vmul.f32 %v882, %v882
        %v915 = vmul.f32 %v883, %v883
        %v916 = vmul.f32 %v884, %v884
        %v917 = vmul.f32 %v885, %v885
        %v918 = vmul.f32 %v886, %v886
        %v919 = vmul.f32 %v887, %v887
        %v920 = vmul.f32 %v888, %v888
        %v921 = vmul.f32 %v889, %v889
        %v922 = vmul.f32 %v890, %v890
        %v923 = vmul.f32 %v891, %v891
        %v924 = vmul.f32 %v892, %v892
        %v925 = vmul.f32 %v893, %v893
        %v926 = vmul.f32 %v894, %v894
        %v927 = vmul.f32 %v895, %v895
        %v928 = vadd.f32 %v863, %v912
        %v929 = vadd.f32 %v864, %v913
        %v930 = vadd.f32 %v865, %v914
        %v931 = vadd.f32 %v866, %v915
        %v932 = vadd.f32 %v867, %v916
        %v933 = vadd.f32 %v868, %v917
        %v934 = vadd.f32 %v869, %v918
        %v935 = vadd.f32 %v870, %v919
        %v936 = vadd.f32 %v871, %v920
        %v937 = vadd.f32 %v872, %v921
        %v938 = vadd.f32 %v873, %v922
        %v939 = vadd.f32 %v874, %v923
        %v940 = vadd.f32 %v875, %v924
        %v941 = vadd.f32 %v876, %v925
        %v942 = vadd.f32 %v877, %v926
        %v943 = vadd.f32 %v878, %v927
        %s944 = scalar_lea.vmem %s171, 288 [#allocation2]
        %v945 = vld [vmem:[%s944] sm:$0xff]
        %v946 = vld [vmem:[%s944 + $0x8] sm:$0xff]
        %v947 = vld [vmem:[%s944 + $0x10] sm:$0xff]
        %v948 = vld [vmem:[%s944 + $0x18] sm:$0xff]
        %v949 = vld [vmem:[%s944 + $0x220] sm:$0xff]
        %v950 = vld [vmem:[%s944 + $0x228] sm:$0xff]
        %v951 = vld [vmem:[%s944 + $0x230] sm:$0xff]
        %v952 = vld [vmem:[%s944 + $0x238] sm:$0xff]
        %v953 = vld [vmem:[%s944 + $0x440] sm:$0xff]
        %v954 = vld [vmem:[%s944 + $0x448] sm:$0xff]
        %v955 = vld [vmem:[%s944 + $0x450] sm:$0xff]
        %v956 = vld [vmem:[%s944 + $0x458] sm:$0xff]
        %v957 = vld [vmem:[%s944 + $0x660] sm:$0xff]
        %v958 = vld [vmem:[%s944 + $0x668] sm:$0xff]
        %v959 = vld [vmem:[%s944 + $0x670] sm:$0xff]
        %v960 = vld [vmem:[%s944 + $0x678] sm:$0xff]
        %v961 = vadd.f32 %v896, %v945
        %v962 = vadd.f32 %v897, %v946
        %v963 = vadd.f32 %v898, %v947
        %v964 = vadd.f32 %v899, %v948
        %v965 = vadd.f32 %v900, %v949
        %v966 = vadd.f32 %v901, %v950
        %v967 = vadd.f32 %v902, %v951
        %v968 = vadd.f32 %v903, %v952
        %v969 = vadd.f32 %v904, %v953
        %v970 = vadd.f32 %v905, %v954
        %v971 = vadd.f32 %v906, %v955
        %v972 = vadd.f32 %v907, %v956
        %v973 = vadd.f32 %v908, %v957
        %v974 = vadd.f32 %v909, %v958
        %v975 = vadd.f32 %v910, %v959
        %v976 = vadd.f32 %v911, %v960
        %v977 = vmul.f32 %v945, %v945
        %v978 = vmul.f32 %v946, %v946
        %v979 = vmul.f32 %v947, %v947
        %v980 = vmul.f32 %v948, %v948
        %v981 = vmul.f32 %v949, %v949
        %v982 = vmul.f32 %v950, %v950
        %v983 = vmul.f32 %v951, %v951
        %v984 = vmul.f32 %v952, %v952
        %v985 = vmul.f32 %v953, %v953
        %v986 = vmul.f32 %v954, %v954
        %v987 = vmul.f32 %v955, %v955
        %v988 = vmul.f32 %v956, %v956
        %v989 = vmul.f32 %v957, %v957
        %v990 = vmul.f32 %v958, %v958
        %v991 = vmul.f32 %v959, %v959
        %v992 = vmul.f32 %v960, %v960
        %v993 = vadd.f32 %v928, %v977
        %v994 = vadd.f32 %v929, %v978
        %v995 = vadd.f32 %v930, %v979
        %v996 = vadd.f32 %v931, %v980
        %v997 = vadd.f32 %v932, %v981
        %v998 = vadd.f32 %v933, %v982
        %v999 = vadd.f32 %v934, %v983
        %v1000 = vadd.f32 %v935, %v984
        %v1001 = vadd.f32 %v936, %v985
        %v1002 = vadd.f32 %v937, %v986
        %v1003 = vadd.f32 %v938, %v987
        %v1004 = vadd.f32 %v939, %v988
        %v1005 = vadd.f32 %v940, %v989
        %v1006 = vadd.f32 %v941, %v990
        %v1007 = vadd.f32 %v942, %v991
        %v1008 = vadd.f32 %v943, %v992
        %s1009 = scalar_lea.vmem %s171, 320 [#allocation2]
        %v1010 = vld [vmem:[%s1009] sm:$0xff]
        %v1011 = vld [vmem:[%s1009 + $0x8] sm:$0xff]
        %v1012 = vld [vmem:[%s1009 + $0x10] sm:$0xff]
        %v1013 = vld [vmem:[%s1009 + $0x18] sm:$0xff]
        %v1014 = vld [vmem:[%s1009 + $0x220] sm:$0xff]
        %v1015 = vld [vmem:[%s1009 + $0x228] sm:$0xff]
        %v1016 = vld [vmem:[%s1009 + $0x230] sm:$0xff]
        %v1017 = vld [vmem:[%s1009 + $0x238] sm:$0xff]
        %v1018 = vld [vmem:[%s1009 + $0x440] sm:$0xff]
        %v1019 = vld [vmem:[%s1009 + $0x448] sm:$0xff]
        %v1020 = vld [vmem:[%s1009 + $0x450] sm:$0xff]
        %v1021 = vld [vmem:[%s1009 + $0x458] sm:$0xff]
        %v1022 = vld [vmem:[%s1009 + $0x660] sm:$0xff]
        %v1023 = vld [vmem:[%s1009 + $0x668] sm:$0xff]
        %v1024 = vld [vmem:[%s1009 + $0x670] sm:$0xff]
        %v1025 = vld [vmem:[%s1009 + $0x678] sm:$0xff]
        %v1026 = vadd.f32 %v961, %v1010
        %v1027 = vadd.f32 %v962, %v1011
        %v1028 = vadd.f32 %v963, %v1012
        %v1029 = vadd.f32 %v964, %v1013
        %v1030 = vadd.f32 %v965, %v1014
        %v1031 = vadd.f32 %v966, %v1015
        %v1032 = vadd.f32 %v967, %v1016
        %v1033 = vadd.f32 %v968, %v1017
        %v1034 = vadd.f32 %v969, %v1018
        %v1035 = vadd.f32 %v970, %v1019
        %v1036 = vadd.f32 %v971, %v1020
        %v1037 = vadd.f32 %v972, %v1021
        %v1038 = vadd.f32 %v973, %v1022
        %v1039 = vadd.f32 %v974, %v1023
        %v1040 = vadd.f32 %v975, %v1024
        %v1041 = vadd.f32 %v976, %v1025
        %v1042 = vmul.f32 %v1010, %v1010
        %v1043 = vmul.f32 %v1011, %v1011
        %v1044 = vmul.f32 %v1012, %v1012
        %v1045 = vmul.f32 %v1013, %v1013
        %v1046 = vmul.f32 %v1014, %v1014
        %v1047 = vmul.f32 %v1015, %v1015
        %v1048 = vmul.f32 %v1016, %v1016
        %v1049 = vmul.f32 %v1017, %v1017
        %v1050 = vmul.f32 %v1018, %v1018
        %v1051 = vmul.f32 %v1019, %v1019
        %v1052 = vmul.f32 %v1020, %v1020
        %v1053 = vmul.f32 %v1021, %v1021
        %v1054 = vmul.f32 %v1022, %v1022
        %v1055 = vmul.f32 %v1023, %v1023
        %v1056 = vmul.f32 %v1024, %v1024
        %v1057 = vmul.f32 %v1025, %v1025
        %v1058 = vadd.f32 %v993, %v1042
        %v1059 = vadd.f32 %v994, %v1043
        %v1060 = vadd.f32 %v995, %v1044
        %v1061 = vadd.f32 %v996, %v1045
        %v1062 = vadd.f32 %v997, %v1046
        %v1063 = vadd.f32 %v998, %v1047
        %v1064 = vadd.f32 %v999, %v1048
        %v1065 = vadd.f32 %v1000, %v1049
        %v1066 = vadd.f32 %v1001, %v1050
        %v1067 = vadd.f32 %v1002, %v1051
        %v1068 = vadd.f32 %v1003, %v1052
        %v1069 = vadd.f32 %v1004, %v1053
        %v1070 = vadd.f32 %v1005, %v1054
        %v1071 = vadd.f32 %v1006, %v1055
        %v1072 = vadd.f32 %v1007, %v1056
        %v1073 = vadd.f32 %v1008, %v1057
        %s1074 = scalar_lea.vmem %s171, 352 [#allocation2]
        %v1075 = vld [vmem:[%s1074] sm:$0xff]
        %v1076 = vld [vmem:[%s1074 + $0x8] sm:$0xff]
        %v1077 = vld [vmem:[%s1074 + $0x10] sm:$0xff]
        %v1078 = vld [vmem:[%s1074 + $0x18] sm:$0xff]
        %v1079 = vld [vmem:[%s1074 + $0x220] sm:$0xff]
        %v1080 = vld [vmem:[%s1074 + $0x228] sm:$0xff]
        %v1081 = vld [vmem:[%s1074 + $0x230] sm:$0xff]
        %v1082 = vld [vmem:[%s1074 + $0x238] sm:$0xff]
        %v1083 = vld [vmem:[%s1074 + $0x440] sm:$0xff]
        %v1084 = vld [vmem:[%s1074 + $0x448] sm:$0xff]
        %v1085 = vld [vmem:[%s1074 + $0x450] sm:$0xff]
        %v1086 = vld [vmem:[%s1074 + $0x458] sm:$0xff]
        %v1087 = vld [vmem:[%s1074 + $0x660] sm:$0xff]
        %v1088 = vld [vmem:[%s1074 + $0x668] sm:$0xff]
        %v1089 = vld [vmem:[%s1074 + $0x670] sm:$0xff]
        %v1090 = vld [vmem:[%s1074 + $0x678] sm:$0xff]
        %v1091 = vadd.f32 %v1026, %v1075
        %v1092 = vadd.f32 %v1027, %v1076
        %v1093 = vadd.f32 %v1028, %v1077
        %v1094 = vadd.f32 %v1029, %v1078
        %v1095 = vadd.f32 %v1030, %v1079
        %v1096 = vadd.f32 %v1031, %v1080
        %v1097 = vadd.f32 %v1032, %v1081
        %v1098 = vadd.f32 %v1033, %v1082
        %v1099 = vadd.f32 %v1034, %v1083
        %v1100 = vadd.f32 %v1035, %v1084
        %v1101 = vadd.f32 %v1036, %v1085
        %v1102 = vadd.f32 %v1037, %v1086
        %v1103 = vadd.f32 %v1038, %v1087
        %v1104 = vadd.f32 %v1039, %v1088
        %v1105 = vadd.f32 %v1040, %v1089
        %v1106 = vadd.f32 %v1041, %v1090
        %v1107 = vmul.f32 %v1075, %v1075
        %v1108 = vmul.f32 %v1076, %v1076
        %v1109 = vmul.f32 %v1077, %v1077
        %v1110 = vmul.f32 %v1078, %v1078
        %v1111 = vmul.f32 %v1079, %v1079
        %v1112 = vmul.f32 %v1080, %v1080
        %v1113 = vmul.f32 %v1081, %v1081
        %v1114 = vmul.f32 %v1082, %v1082
        %v1115 = vmul.f32 %v1083, %v1083
        %v1116 = vmul.f32 %v1084, %v1084
        %v1117 = vmul.f32 %v1085, %v1085
        %v1118 = vmul.f32 %v1086, %v1086
        %v1119 = vmul.f32 %v1087, %v1087
        %v1120 = vmul.f32 %v1088, %v1088
        %v1121 = vmul.f32 %v1089, %v1089
        %v1122 = vmul.f32 %v1090, %v1090
        %v1123 = vadd.f32 %v1058, %v1107
        %v1124 = vadd.f32 %v1059, %v1108
        %v1125 = vadd.f32 %v1060, %v1109
        %v1126 = vadd.f32 %v1061, %v1110
        %v1127 = vadd.f32 %v1062, %v1111
        %v1128 = vadd.f32 %v1063, %v1112
        %v1129 = vadd.f32 %v1064, %v1113
        %v1130 = vadd.f32 %v1065, %v1114
        %v1131 = vadd.f32 %v1066, %v1115
        %v1132 = vadd.f32 %v1067, %v1116
        %v1133 = vadd.f32 %v1068, %v1117
        %v1134 = vadd.f32 %v1069, %v1118
        %v1135 = vadd.f32 %v1070, %v1119
        %v1136 = vadd.f32 %v1071, %v1120
        %v1137 = vadd.f32 %v1072, %v1121
        %v1138 = vadd.f32 %v1073, %v1122
        %s1139 = scalar_lea.vmem %s171, 384 [#allocation2]
        %v1140 = vld [vmem:[%s1139] sm:$0xff]
        %v1141 = vld [vmem:[%s1139 + $0x8] sm:$0xff]
        %v1142 = vld [vmem:[%s1139 + $0x10] sm:$0xff]
        %v1143 = vld [vmem:[%s1139 + $0x18] sm:$0xff]
        %v1144 = vld [vmem:[%s1139 + $0x220] sm:$0xff]
        %v1145 = vld [vmem:[%s1139 + $0x228] sm:$0xff]
        %v1146 = vld [vmem:[%s1139 + $0x230] sm:$0xff]
        %v1147 = vld [vmem:[%s1139 + $0x238] sm:$0xff]
        %v1148 = vld [vmem:[%s1139 + $0x440] sm:$0xff]
        %v1149 = vld [vmem:[%s1139 + $0x448] sm:$0xff]
        %v1150 = vld [vmem:[%s1139 + $0x450] sm:$0xff]
        %v1151 = vld [vmem:[%s1139 + $0x458] sm:$0xff]
        %v1152 = vld [vmem:[%s1139 + $0x660] sm:$0xff]
        %v1153 = vld [vmem:[%s1139 + $0x668] sm:$0xff]
        %v1154 = vld [vmem:[%s1139 + $0x670] sm:$0xff]
        %v1155 = vld [vmem:[%s1139 + $0x678] sm:$0xff]
        %v1156 = vadd.f32 %v1091, %v1140
        %v1157 = vadd.f32 %v1092, %v1141
        %v1158 = vadd.f32 %v1093, %v1142
        %v1159 = vadd.f32 %v1094, %v1143
        %v1160 = vadd.f32 %v1095, %v1144
        %v1161 = vadd.f32 %v1096, %v1145
        %v1162 = vadd.f32 %v1097, %v1146
        %v1163 = vadd.f32 %v1098, %v1147
        %v1164 = vadd.f32 %v1099, %v1148
        %v1165 = vadd.f32 %v1100, %v1149
        %v1166 = vadd.f32 %v1101, %v1150
        %v1167 = vadd.f32 %v1102, %v1151
        %v1168 = vadd.f32 %v1103, %v1152
        %v1169 = vadd.f32 %v1104, %v1153
        %v1170 = vadd.f32 %v1105, %v1154
        %v1171 = vadd.f32 %v1106, %v1155
        %v1172 = vmul.f32 %v1140, %v1140
        %v1173 = vmul.f32 %v1141, %v1141
        %v1174 = vmul.f32 %v1142, %v1142
        %v1175 = vmul.f32 %v1143, %v1143
        %v1176 = vmul.f32 %v1144, %v1144
        %v1177 = vmul.f32 %v1145, %v1145
        %v1178 = vmul.f32 %v1146, %v1146
        %v1179 = vmul.f32 %v1147, %v1147
        %v1180 = vmul.f32 %v1148, %v1148
        %v1181 = vmul.f32 %v1149, %v1149
        %v1182 = vmul.f32 %v1150, %v1150
        %v1183 = vmul.f32 %v1151, %v1151
        %v1184 = vmul.f32 %v1152, %v1152
        %v1185 = vmul.f32 %v1153, %v1153
        %v1186 = vmul.f32 %v1154, %v1154
        %v1187 = vmul.f32 %v1155, %v1155
        %v1188 = vadd.f32 %v1123, %v1172
        %v1189 = vadd.f32 %v1124, %v1173
        %v1190 = vadd.f32 %v1125, %v1174
        %v1191 = vadd.f32 %v1126, %v1175
        %v1192 = vadd.f32 %v1127, %v1176
        %v1193 = vadd.f32 %v1128, %v1177
        %v1194 = vadd.f32 %v1129, %v1178
        %v1195 = vadd.f32 %v1130, %v1179
        %v1196 = vadd.f32 %v1131, %v1180
        %v1197 = vadd.f32 %v1132, %v1181
        %v1198 = vadd.f32 %v1133, %v1182
        %v1199 = vadd.f32 %v1134, %v1183
        %v1200 = vadd.f32 %v1135, %v1184
        %v1201 = vadd.f32 %v1136, %v1185
        %v1202 = vadd.f32 %v1137, %v1186
        %v1203 = vadd.f32 %v1138, %v1187
        %s1204 = scalar_lea.vmem %s171, 416 [#allocation2]
        %v1205 = vld [vmem:[%s1204] sm:$0xff]
        %v1206 = vld [vmem:[%s1204 + $0x8] sm:$0xff]
        %v1207 = vld [vmem:[%s1204 + $0x10] sm:$0xff]
        %v1208 = vld [vmem:[%s1204 + $0x18] sm:$0xff]
        %v1209 = vld [vmem:[%s1204 + $0x220] sm:$0xff]
        %v1210 = vld [vmem:[%s1204 + $0x228] sm:$0xff]
        %v1211 = vld [vmem:[%s1204 + $0x230] sm:$0xff]
        %v1212 = vld [vmem:[%s1204 + $0x238] sm:$0xff]
        %v1213 = vld [vmem:[%s1204 + $0x440] sm:$0xff]
        %v1214 = vld [vmem:[%s1204 + $0x448] sm:$0xff]
        %v1215 = vld [vmem:[%s1204 + $0x450] sm:$0xff]
        %v1216 = vld [vmem:[%s1204 + $0x458] sm:$0xff]
        %v1217 = vld [vmem:[%s1204 + $0x660] sm:$0xff]
        %v1218 = vld [vmem:[%s1204 + $0x668] sm:$0xff]
        %v1219 = vld [vmem:[%s1204 + $0x670] sm:$0xff]
        %v1220 = vld [vmem:[%s1204 + $0x678] sm:$0xff]
        %v1221 = vadd.f32 %v1156, %v1205
        %v1222 = vadd.f32 %v1157, %v1206
        %v1223 = vadd.f32 %v1158, %v1207
        %v1224 = vadd.f32 %v1159, %v1208
        %v1225 = vadd.f32 %v1160, %v1209
        %v1226 = vadd.f32 %v1161, %v1210
        %v1227 = vadd.f32 %v1162, %v1211
        %v1228 = vadd.f32 %v1163, %v1212
        %v1229 = vadd.f32 %v1164, %v1213
        %v1230 = vadd.f32 %v1165, %v1214
        %v1231 = vadd.f32 %v1166, %v1215
        %v1232 = vadd.f32 %v1167, %v1216
        %v1233 = vadd.f32 %v1168, %v1217
        %v1234 = vadd.f32 %v1169, %v1218
        %v1235 = vadd.f32 %v1170, %v1219
        %v1236 = vadd.f32 %v1171, %v1220
        %v1237 = vmul.f32 %v1205, %v1205
        %v1238 = vmul.f32 %v1206, %v1206
        %v1239 = vmul.f32 %v1207, %v1207
        %v1240 = vmul.f32 %v1208, %v1208
        %v1241 = vmul.f32 %v1209, %v1209
        %v1242 = vmul.f32 %v1210, %v1210
        %v1243 = vmul.f32 %v1211, %v1211
        %v1244 = vmul.f32 %v1212, %v1212
        %v1245 = vmul.f32 %v1213, %v1213
        %v1246 = vmul.f32 %v1214, %v1214
        %v1247 = vmul.f32 %v1215, %v1215
        %v1248 = vmul.f32 %v1216, %v1216
        %v1249 = vmul.f32 %v1217, %v1217
        %v1250 = vmul.f32 %v1218, %v1218
        %v1251 = vmul.f32 %v1219, %v1219
        %v1252 = vmul.f32 %v1220, %v1220
        %v1253 = vadd.f32 %v1188, %v1237
        %v1254 = vadd.f32 %v1189, %v1238
        %v1255 = vadd.f32 %v1190, %v1239
        %v1256 = vadd.f32 %v1191, %v1240
        %v1257 = vadd.f32 %v1192, %v1241
        %v1258 = vadd.f32 %v1193, %v1242
        %v1259 = vadd.f32 %v1194, %v1243
        %v1260 = vadd.f32 %v1195, %v1244
        %v1261 = vadd.f32 %v1196, %v1245
        %v1262 = vadd.f32 %v1197, %v1246
        %v1263 = vadd.f32 %v1198, %v1247
        %v1264 = vadd.f32 %v1199, %v1248
        %v1265 = vadd.f32 %v1200, %v1249
        %v1266 = vadd.f32 %v1201, %v1250
        %v1267 = vadd.f32 %v1202, %v1251
        %v1268 = vadd.f32 %v1203, %v1252
        %s1269 = scalar_lea.vmem %s171, 448 [#allocation2]
        %v1270 = vld [vmem:[%s1269] sm:$0xff]
        %v1271 = vld [vmem:[%s1269 + $0x8] sm:$0xff]
        %v1272 = vld [vmem:[%s1269 + $0x10] sm:$0xff]
        %v1273 = vld [vmem:[%s1269 + $0x18] sm:$0xff]
        %v1274 = vld [vmem:[%s1269 + $0x220] sm:$0xff]
        %v1275 = vld [vmem:[%s1269 + $0x228] sm:$0xff]
        %v1276 = vld [vmem:[%s1269 + $0x230] sm:$0xff]
        %v1277 = vld [vmem:[%s1269 + $0x238] sm:$0xff]
        %v1278 = vld [vmem:[%s1269 + $0x440] sm:$0xff]
        %v1279 = vld [vmem:[%s1269 + $0x448] sm:$0xff]
        %v1280 = vld [vmem:[%s1269 + $0x450] sm:$0xff]
        %v1281 = vld [vmem:[%s1269 + $0x458] sm:$0xff]
        %v1282 = vld [vmem:[%s1269 + $0x660] sm:$0xff]
        %v1283 = vld [vmem:[%s1269 + $0x668] sm:$0xff]
        %v1284 = vld [vmem:[%s1269 + $0x670] sm:$0xff]
        %v1285 = vld [vmem:[%s1269 + $0x678] sm:$0xff]
        %v1286 = vadd.f32 %v1221, %v1270
        %v1287 = vadd.f32 %v1222, %v1271
        %v1288 = vadd.f32 %v1223, %v1272
        %v1289 = vadd.f32 %v1224, %v1273
        %v1290 = vadd.f32 %v1225, %v1274
        %v1291 = vadd.f32 %v1226, %v1275
        %v1292 = vadd.f32 %v1227, %v1276
        %v1293 = vadd.f32 %v1228, %v1277
        %v1294 = vadd.f32 %v1229, %v1278
        %v1295 = vadd.f32 %v1230, %v1279
        %v1296 = vadd.f32 %v1231, %v1280
        %v1297 = vadd.f32 %v1232, %v1281
        %v1298 = vadd.f32 %v1233, %v1282
        %v1299 = vadd.f32 %v1234, %v1283
        %v1300 = vadd.f32 %v1235, %v1284
        %v1301 = vadd.f32 %v1236, %v1285
        %v1302 = vmul.f32 %v1270, %v1270
        %v1303 = vmul.f32 %v1271, %v1271
        %v1304 = vmul.f32 %v1272, %v1272
        %v1305 = vmul.f32 %v1273, %v1273
        %v1306 = vmul.f32 %v1274, %v1274
        %v1307 = vmul.f32 %v1275, %v1275
        %v1308 = vmul.f32 %v1276, %v1276
        %v1309 = vmul.f32 %v1277, %v1277
        %v1310 = vmul.f32 %v1278, %v1278
        %v1311 = vmul.f32 %v1279, %v1279
        %v1312 = vmul.f32 %v1280, %v1280
        %v1313 = vmul.f32 %v1281, %v1281
        %v1314 = vmul.f32 %v1282, %v1282
        %v1315 = vmul.f32 %v1283, %v1283
        %v1316 = vmul.f32 %v1284, %v1284
        %v1317 = vmul.f32 %v1285, %v1285
        %v1318 = vadd.f32 %v1253, %v1302
        %v1319 = vadd.f32 %v1254, %v1303
        %v1320 = vadd.f32 %v1255, %v1304
        %v1321 = vadd.f32 %v1256, %v1305
        %v1322 = vadd.f32 %v1257, %v1306
        %v1323 = vadd.f32 %v1258, %v1307
        %v1324 = vadd.f32 %v1259, %v1308
        %v1325 = vadd.f32 %v1260, %v1309
        %v1326 = vadd.f32 %v1261, %v1310
        %v1327 = vadd.f32 %v1262, %v1311
        %v1328 = vadd.f32 %v1263, %v1312
        %v1329 = vadd.f32 %v1264, %v1313
        %v1330 = vadd.f32 %v1265, %v1314
        %v1331 = vadd.f32 %v1266, %v1315
        %v1332 = vadd.f32 %v1267, %v1316
        %v1333 = vadd.f32 %v1268, %v1317
        %s1334 = scalar_lea.vmem %s171, 480 [#allocation2]
        %v1335 = vld [vmem:[%s1334] sm:$0xff]
        %v1336 = vld [vmem:[%s1334 + $0x8] sm:$0xff]
        %v1337 = vld [vmem:[%s1334 + $0x10] sm:$0xff]
        %v1338 = vld [vmem:[%s1334 + $0x18] sm:$0xff]
        %v1339 = vld [vmem:[%s1334 + $0x220] sm:$0xff]
        %v1340 = vld [vmem:[%s1334 + $0x228] sm:$0xff]
        %v1341 = vld [vmem:[%s1334 + $0x230] sm:$0xff]
        %v1342 = vld [vmem:[%s1334 + $0x238] sm:$0xff]
        %v1343 = vld [vmem:[%s1334 + $0x440] sm:$0xff]
        %v1344 = vld [vmem:[%s1334 + $0x448] sm:$0xff]
        %v1345 = vld [vmem:[%s1334 + $0x450] sm:$0xff]
        %v1346 = vld [vmem:[%s1334 + $0x458] sm:$0xff]
        %v1347 = vld [vmem:[%s1334 + $0x660] sm:$0xff]
        %v1348 = vld [vmem:[%s1334 + $0x668] sm:$0xff]
        %v1349 = vld [vmem:[%s1334 + $0x670] sm:$0xff]
        %v1350 = vld [vmem:[%s1334 + $0x678] sm:$0xff]
        %v1351 = vadd.f32 %v1286, %v1335
        %v1352 = vadd.f32 %v1287, %v1336
        %v1353 = vadd.f32 %v1288, %v1337
        %v1354 = vadd.f32 %v1289, %v1338
        %v1355 = vadd.f32 %v1290, %v1339
        %v1356 = vadd.f32 %v1291, %v1340
        %v1357 = vadd.f32 %v1292, %v1341
        %v1358 = vadd.f32 %v1293, %v1342
        %v1359 = vadd.f32 %v1294, %v1343
        %v1360 = vadd.f32 %v1295, %v1344
        %v1361 = vadd.f32 %v1296, %v1345
        %v1362 = vadd.f32 %v1297, %v1346
        %v1363 = vadd.f32 %v1298, %v1347
        %v1364 = vadd.f32 %v1299, %v1348
        %v1365 = vadd.f32 %v1300, %v1349
        %v1366 = vadd.f32 %v1301, %v1350
        %v1367 = vmul.f32 %v1335, %v1335
        %v1368 = vmul.f32 %v1336, %v1336
        %v1369 = vmul.f32 %v1337, %v1337
        %v1370 = vmul.f32 %v1338, %v1338
        %v1371 = vmul.f32 %v1339, %v1339
        %v1372 = vmul.f32 %v1340, %v1340
        %v1373 = vmul.f32 %v1341, %v1341
        %v1374 = vmul.f32 %v1342, %v1342
        %v1375 = vmul.f32 %v1343, %v1343
        %v1376 = vmul.f32 %v1344, %v1344
        %v1377 = vmul.f32 %v1345, %v1345
        %v1378 = vmul.f32 %v1346, %v1346
        %v1379 = vmul.f32 %v1347, %v1347
        %v1380 = vmul.f32 %v1348, %v1348
        %v1381 = vmul.f32 %v1349, %v1349
        %v1382 = vmul.f32 %v1350, %v1350
        %v1383 = vadd.f32 %v1318, %v1367
        %v1384 = vadd.f32 %v1319, %v1368
        %v1385 = vadd.f32 %v1320, %v1369
        %v1386 = vadd.f32 %v1321, %v1370
        %v1387 = vadd.f32 %v1322, %v1371
        %v1388 = vadd.f32 %v1323, %v1372
        %v1389 = vadd.f32 %v1324, %v1373
        %v1390 = vadd.f32 %v1325, %v1374
        %v1391 = vadd.f32 %v1326, %v1375
        %v1392 = vadd.f32 %v1327, %v1376
        %v1393 = vadd.f32 %v1328, %v1377
        %v1394 = vadd.f32 %v1329, %v1378
        %v1395 = vadd.f32 %v1330, %v1379
        %v1396 = vadd.f32 %v1331, %v1380
        %v1397 = vadd.f32 %v1332, %v1381
        %v1398 = vadd.f32 %v1333, %v1382
        %v1399 = vmul.f32 %v1351, 0.0625
        %v1400 = vmul.f32 %v1352, 0.0625
        %v1401 = vmul.f32 %v1353, 0.0625
        %v1402 = vmul.f32 %v1354, 0.0625
        %v1403 = vmul.f32 %v1355, 0.0625
        %v1404 = vmul.f32 %v1356, 0.0625
        %v1405 = vmul.f32 %v1357, 0.0625
        %v1406 = vmul.f32 %v1358, 0.0625
        %v1407 = vmul.f32 %v1359, 0.0625
        %v1408 = vmul.f32 %v1360, 0.0625
        %v1409 = vmul.f32 %v1361, 0.0625
        %v1410 = vmul.f32 %v1362, 0.0625
        %v1411 = vmul.f32 %v1363, 0.0625
        %v1412 = vmul.f32 %v1364, 0.0625
        %v1413 = vmul.f32 %v1365, 0.0625
        %v1414 = vmul.f32 %v1366, 0.0625
        %v1415 = vmul.f32 %v1383, 0.0625
        %v1416 = vmul.f32 %v1384, 0.0625
        %v1417 = vmul.f32 %v1385, 0.0625
        %v1418 = vmul.f32 %v1386, 0.0625
        %v1419 = vmul.f32 %v1387, 0.0625
        %v1420 = vmul.f32 %v1388, 0.0625
        %v1421 = vmul.f32 %v1389, 0.0625
        %v1422 = vmul.f32 %v1390, 0.0625
        %v1423 = vmul.f32 %v1391, 0.0625
        %v1424 = vmul.f32 %v1392, 0.0625
        %v1425 = vmul.f32 %v1393, 0.0625
        %v1426 = vmul.f32 %v1394, 0.0625
        %v1427 = vmul.f32 %v1395, 0.0625
        %v1428 = vmul.f32 %v1396, 0.0625
        %v1429 = vmul.f32 %v1397, 0.0625
        %v1430 = vmul.f32 %v1398, 0.0625
        %vm1431 = vcmp.le.f32.partialorder %v261, 1000.0
        %vm1432 = vcmp.le.f32.partialorder %v262, 1000.0
        %vm1433 = vcmp.le.f32.partialorder %v263, 1000.0
        %vm1434 = vcmp.le.f32.partialorder %v264, 1000.0
        %vm1435 = vcmp.le.f32.partialorder %v265, 1000.0
        %vm1436 = vcmp.le.f32.partialorder %v266, 1000.0
        %vm1437 = vcmp.le.f32.partialorder %v267, 1000.0
        %vm1438 = vcmp.le.f32.partialorder %v268, 1000.0
        %vm1439 = vcmp.le.f32.partialorder %v269, 1000.0
        %vm1440 = vcmp.le.f32.partialorder %v270, 1000.0
        %vm1441 = vcmp.le.f32.partialorder %v271, 1000.0
        %vm1442 = vcmp.le.f32.partialorder %v272, 1000.0
        %vm1443 = vcmp.le.f32.partialorder %v273, 1000.0
        %vm1444 = vcmp.le.f32.partialorder %v274, 1000.0
        %vm1445 = vcmp.le.f32.partialorder %v275, 1000.0
        %vm1446 = vcmp.le.f32.partialorder %v276, 1000.0
        %v1447 = vmax.f32 %v261, 1.0
        %v1448 = vmax.f32 %v262, 1.0
        %v1449 = vmax.f32 %v263, 1.0
        %v1450 = vmax.f32 %v264, 1.0
        %v1451 = vmax.f32 %v265, 1.0
        %v1452 = vmax.f32 %v266, 1.0
        %v1453 = vmax.f32 %v267, 1.0
        %v1454 = vmax.f32 %v268, 1.0
        %v1455 = vmax.f32 %v269, 1.0
        %v1456 = vmax.f32 %v270, 1.0
        %v1457 = vmax.f32 %v271, 1.0
        %v1458 = vmax.f32 %v272, 1.0
        %v1459 = vmax.f32 %v273, 1.0
        %v1460 = vmax.f32 %v274, 1.0
        %v1461 = vmax.f32 %v275, 1.0
        %v1462 = vmax.f32 %v276, 1.0
        %v1463 = vrcp.pop %v1447
        %v1464 = vmul.f32 %v1447, %v1463
        %v1465 = vsub.f32 1.0, %v1464
        %v1466 = vmul.f32 %v1463, %v1465
        %v1467 = vadd.f32 %v1463, %v1466
        %vm1468 = vweird.f32 %v1447
        %vm1469 = vweird.f32 %v1463
        %vm1470 = vmor %vm1468, %vm1469
        %v1471 = vsel %vm1470, %v1463, %v1467
        %v1472 = vand.u32 2147483647, %v1447
        %vm1473 = vcmp.eq.f32.partialorder %v1472, 8.507059e+37
        %v1474 = vand.u32 %v1447, 2147483648
        %v1475 = vor.u32 1.1754944e-38, %v1474
        %v1476 = vsel %vm1473, %v1475, %v1471
        %v1477 = vmul.f32 1.0, %v1476
        %v1478 = vrcp.pop %v1448
        %v1479 = vmul.f32 %v1448, %v1478
        %v1480 = vsub.f32 1.0, %v1479
        %v1481 = vmul.f32 %v1478, %v1480
        %v1482 = vadd.f32 %v1478, %v1481
        %vm1483 = vweird.f32 %v1448
        %vm1484 = vweird.f32 %v1478
        %vm1485 = vmor %vm1483, %vm1484
        %v1486 = vsel %vm1485, %v1478, %v1482
        %v1487 = vand.u32 2147483647, %v1448
        %vm1488 = vcmp.eq.f32.partialorder %v1487, 8.507059e+37
        %v1489 = vand.u32 %v1448, 2147483648
        %v1490 = vor.u32 1.1754944e-38, %v1489
        %v1491 = vsel %vm1488, %v1490, %v1486
        %v1492 = vmul.f32 1.0, %v1491
        %v1493 = vrcp.pop %v1449
        %v1494 = vmul.f32 %v1449, %v1493
        %v1495 = vsub.f32 1.0, %v1494
        %v1496 = vmul.f32 %v1493, %v1495
        %v1497 = vadd.f32 %v1493, %v1496
        %vm1498 = vweird.f32 %v1449
        %vm1499 = vweird.f32 %v1493
        %vm1500 = vmor %vm1498, %vm1499
        %v1501 = vsel %vm1500, %v1493, %v1497
        %v1502 = vand.u32 2147483647, %v1449
        %vm1503 = vcmp.eq.f32.partialorder %v1502, 8.507059e+37
        %v1504 = vand.u32 %v1449, 2147483648
        %v1505 = vor.u32 1.1754944e-38, %v1504
        %v1506 = vsel %vm1503, %v1505, %v1501
        %v1507 = vmul.f32 1.0, %v1506
        %v1508 = vrcp.pop %v1450
        %v1509 = vmul.f32 %v1450, %v1508
        %v1510 = vsub.f32 1.0, %v1509
        %v1511 = vmul.f32 %v1508, %v1510
        %v1512 = vadd.f32 %v1508, %v1511
        %vm1513 = vweird.f32 %v1450
        %vm1514 = vweird.f32 %v1508
        %vm1515 = vmor %vm1513, %vm1514
        %v1516 = vsel %vm1515, %v1508, %v1512
        %v1517 = vand.u32 2147483647, %v1450
        %vm1518 = vcmp.eq.f32.partialorder %v1517, 8.507059e+37
        %v1519 = vand.u32 %v1450, 2147483648
        %v1520 = vor.u32 1.1754944e-38, %v1519
        %v1521 = vsel %vm1518, %v1520, %v1516
        %v1522 = vmul.f32 1.0, %v1521
        %v1523 = vrcp.pop %v1451
        %v1524 = vmul.f32 %v1451, %v1523
        %v1525 = vsub.f32 1.0, %v1524
        %v1526 = vmul.f32 %v1523, %v1525
        %v1527 = vadd.f32 %v1523, %v1526
        %vm1528 = vweird.f32 %v1451
        %vm1529 = vweird.f32 %v1523
        %vm1530 = vmor %vm1528, %vm1529
        %v1531 = vsel %vm1530, %v1523, %v1527
        %v1532 = vand.u32 2147483647, %v1451
        %vm1533 = vcmp.eq.f32.partialorder %v1532, 8.507059e+37
        %v1534 = vand.u32 %v1451, 2147483648
        %v1535 = vor.u32 1.1754944e-38, %v1534
        %v1536 = vsel %vm1533, %v1535, %v1531
        %v1537 = vmul.f32 1.0, %v1536
        %v1538 = vrcp.pop %v1452
        %v1539 = vmul.f32 %v1452, %v1538
        %v1540 = vsub.f32 1.0, %v1539
        %v1541 = vmul.f32 %v1538, %v1540
        %v1542 = vadd.f32 %v1538, %v1541
        %vm1543 = vweird.f32 %v1452
        %vm1544 = vweird.f32 %v1538
        %vm1545 = vmor %vm1543, %vm1544
        %v1546 = vsel %vm1545, %v1538, %v1542
        %v1547 = vand.u32 2147483647, %v1452
        %vm1548 = vcmp.eq.f32.partialorder %v1547, 8.507059e+37
        %v1549 = vand.u32 %v1452, 2147483648
        %v1550 = vor.u32 1.1754944e-38, %v1549
        %v1551 = vsel %vm1548, %v1550, %v1546
        %v1552 = vmul.f32 1.0, %v1551
        %v1553 = vrcp.pop %v1453
        %v1554 = vmul.f32 %v1453, %v1553
        %v1555 = vsub.f32 1.0, %v1554
        %v1556 = vmul.f32 %v1553, %v1555
        %v1557 = vadd.f32 %v1553, %v1556
        %vm1558 = vweird.f32 %v1453
        %vm1559 = vweird.f32 %v1553
        %vm1560 = vmor %vm1558, %vm1559
        %v1561 = vsel %vm1560, %v1553, %v1557
        %v1562 = vand.u32 2147483647, %v1453
        %vm1563 = vcmp.eq.f32.partialorder %v1562, 8.507059e+37
        %v1564 = vand.u32 %v1453, 2147483648
        %v1565 = vor.u32 1.1754944e-38, %v1564
        %v1566 = vsel %vm1563, %v1565, %v1561
        %v1567 = vmul.f32 1.0, %v1566
        %v1568 = vrcp.pop %v1454
        %v1569 = vmul.f32 %v1454, %v1568
        %v1570 = vsub.f32 1.0, %v1569
        %v1571 = vmul.f32 %v1568, %v1570
        %v1572 = vadd.f32 %v1568, %v1571
        %vm1573 = vweird.f32 %v1454
        %vm1574 = vweird.f32 %v1568
        %vm1575 = vmor %vm1573, %vm1574
        %v1576 = vsel %vm1575, %v1568, %v1572
        %v1577 = vand.u32 2147483647, %v1454
        %vm1578 = vcmp.eq.f32.partialorder %v1577, 8.507059e+37
        %v1579 = vand.u32 %v1454, 2147483648
        %v1580 = vor.u32 1.1754944e-38, %v1579
        %v1581 = vsel %vm1578, %v1580, %v1576
        %v1582 = vmul.f32 1.0, %v1581
        %v1583 = vrcp.pop %v1455
        %v1584 = vmul.f32 %v1455, %v1583
        %v1585 = vsub.f32 1.0, %v1584
        %v1586 = vmul.f32 %v1583, %v1585
        %v1587 = vadd.f32 %v1583, %v1586
        %vm1588 = vweird.f32 %v1455
        %vm1589 = vweird.f32 %v1583
        %vm1590 = vmor %vm1588, %vm1589
        %v1591 = vsel %vm1590, %v1583, %v1587
        %v1592 = vand.u32 2147483647, %v1455
        %vm1593 = vcmp.eq.f32.partialorder %v1592, 8.507059e+37
        %v1594 = vand.u32 %v1455, 2147483648
        %v1595 = vor.u32 1.1754944e-38, %v1594
        %v1596 = vsel %vm1593, %v1595, %v1591
        %v1597 = vmul.f32 1.0, %v1596
        %v1598 = vrcp.pop %v1456
        %v1599 = vmul.f32 %v1456, %v1598
        %v1600 = vsub.f32 1.0, %v1599
        %v1601 = vmul.f32 %v1598, %v1600
        %v1602 = vadd.f32 %v1598, %v1601
        %vm1603 = vweird.f32 %v1456
        %vm1604 = vweird.f32 %v1598
        %vm1605 = vmor %vm1603, %vm1604
        %v1606 = vsel %vm1605, %v1598, %v1602
        %v1607 = vand.u32 2147483647, %v1456
        %vm1608 = vcmp.eq.f32.partialorder %v1607, 8.507059e+37
        %v1609 = vand.u32 %v1456, 2147483648
        %v1610 = vor.u32 1.1754944e-38, %v1609
        %v1611 = vsel %vm1608, %v1610, %v1606
        %v1612 = vmul.f32 1.0, %v1611
        %v1613 = vrcp.pop %v1457
        %v1614 = vmul.f32 %v1457, %v1613
        %v1615 = vsub.f32 1.0, %v1614
        %v1616 = vmul.f32 %v1613, %v1615
        %v1617 = vadd.f32 %v1613, %v1616
        %vm1618 = vweird.f32 %v1457
        %vm1619 = vweird.f32 %v1613
        %vm1620 = vmor %vm1618, %vm1619
        %v1621 = vsel %vm1620, %v1613, %v1617
        %v1622 = vand.u32 2147483647, %v1457
        %vm1623 = vcmp.eq.f32.partialorder %v1622, 8.507059e+37
        %v1624 = vand.u32 %v1457, 2147483648
        %v1625 = vor.u32 1.1754944e-38, %v1624
        %v1626 = vsel %vm1623, %v1625, %v1621
        %v1627 = vmul.f32 1.0, %v1626
        %v1628 = vrcp.pop %v1458
        %v1629 = vmul.f32 %v1458, %v1628
        %v1630 = vsub.f32 1.0, %v1629
        %v1631 = vmul.f32 %v1628, %v1630
        %v1632 = vadd.f32 %v1628, %v1631
        %vm1633 = vweird.f32 %v1458
        %vm1634 = vweird.f32 %v1628
        %vm1635 = vmor %vm1633, %vm1634
        %v1636 = vsel %vm1635, %v1628, %v1632
        %v1637 = vand.u32 2147483647, %v1458
        %vm1638 = vcmp.eq.f32.partialorder %v1637, 8.507059e+37
        %v1639 = vand.u32 %v1458, 2147483648
        %v1640 = vor.u32 1.1754944e-38, %v1639
        %v1641 = vsel %vm1638, %v1640, %v1636
        %v1642 = vmul.f32 1.0, %v1641
        %v1643 = vrcp.pop %v1459
        %v1644 = vmul.f32 %v1459, %v1643
        %v1645 = vsub.f32 1.0, %v1644
        %v1646 = vmul.f32 %v1643, %v1645
        %v1647 = vadd.f32 %v1643, %v1646
        %vm1648 = vweird.f32 %v1459
        %vm1649 = vweird.f32 %v1643
        %vm1650 = vmor %vm1648, %vm1649
        %v1651 = vsel %vm1650, %v1643, %v1647
        %v1652 = vand.u32 2147483647, %v1459
        %vm1653 = vcmp.eq.f32.partialorder %v1652, 8.507059e+37
        %v1654 = vand.u32 %v1459, 2147483648
        %v1655 = vor.u32 1.1754944e-38, %v1654
        %v1656 = vsel %vm1653, %v1655, %v1651
        %v1657 = vmul.f32 1.0, %v1656
        %v1658 = vrcp.pop %v1460
        %v1659 = vmul.f32 %v1460, %v1658
        %v1660 = vsub.f32 1.0, %v1659
        %v1661 = vmul.f32 %v1658, %v1660
        %v1662 = vadd.f32 %v1658, %v1661
        %vm1663 = vweird.f32 %v1460
        %vm1664 = vweird.f32 %v1658
        %vm1665 = vmor %vm1663, %vm1664
        %v1666 = vsel %vm1665, %v1658, %v1662
        %v1667 = vand.u32 2147483647, %v1460
        %vm1668 = vcmp.eq.f32.partialorder %v1667, 8.507059e+37
        %v1669 = vand.u32 %v1460, 2147483648
        %v1670 = vor.u32 1.1754944e-38, %v1669
        %v1671 = vsel %vm1668, %v1670, %v1666
        %v1672 = vmul.f32 1.0, %v1671
        %v1673 = vrcp.pop %v1461
        %v1674 = vmul.f32 %v1461, %v1673
        %v1675 = vsub.f32 1.0, %v1674
        %v1676 = vmul.f32 %v1673, %v1675
        %v1677 = vadd.f32 %v1673, %v1676
        %vm1678 = vweird.f32 %v1461
        %vm1679 = vweird.f32 %v1673
        %vm1680 = vmor %vm1678, %vm1679
        %v1681 = vsel %vm1680, %v1673, %v1677
        %v1682 = vand.u32 2147483647, %v1461
        %vm1683 = vcmp.eq.f32.partialorder %v1682, 8.507059e+37
        %v1684 = vand.u32 %v1461, 2147483648
        %v1685 = vor.u32 1.1754944e-38, %v1684
        %v1686 = vsel %vm1683, %v1685, %v1681
        %v1687 = vmul.f32 1.0, %v1686
        %v1688 = vrcp.pop %v1462
        %v1689 = vmul.f32 %v1462, %v1688
        %v1690 = vsub.f32 1.0, %v1689
        %v1691 = vmul.f32 %v1688, %v1690
        %v1692 = vadd.f32 %v1688, %v1691
        %vm1693 = vweird.f32 %v1462
        %vm1694 = vweird.f32 %v1688
        %vm1695 = vmor %vm1693, %vm1694
        %v1696 = vsel %vm1695, %v1688, %v1692
        %v1697 = vand.u32 2147483647, %v1462
        %vm1698 = vcmp.eq.f32.partialorder %v1697, 8.507059e+37
        %v1699 = vand.u32 %v1462, 2147483648
        %v1700 = vor.u32 1.1754944e-38, %v1699
        %v1701 = vsel %vm1698, %v1700, %v1696
        %v1702 = vmul.f32 1.0, %v1701
        %v1703 = vsub.f32 %v261, 1.0
        %v1704 = vsub.f32 %v262, 1.0
        %v1705 = vsub.f32 %v263, 1.0
        %v1706 = vsub.f32 %v264, 1.0
        %v1707 = vsub.f32 %v265, 1.0
        %v1708 = vsub.f32 %v266, 1.0
        %v1709 = vsub.f32 %v267, 1.0
        %v1710 = vsub.f32 %v268, 1.0
        %v1711 = vsub.f32 %v269, 1.0
        %v1712 = vsub.f32 %v270, 1.0
        %v1713 = vsub.f32 %v271, 1.0
        %v1714 = vsub.f32 %v272, 1.0
        %v1715 = vsub.f32 %v273, 1.0
        %v1716 = vsub.f32 %v274, 1.0
        %v1717 = vsub.f32 %v275, 1.0
        %v1718 = vsub.f32 %v276, 1.0
        %v1719 = vld [vmem:[%s181] sm:$0xff]
        %v1720 = vld [vmem:[%s181 + $0x8] sm:$0xff]
        %v1721 = vld [vmem:[%s181 + $0x10] sm:$0xff]
        %v1722 = vld [vmem:[%s181 + $0x18] sm:$0xff]
        %v1723 = vld [vmem:[%s181 + $0xc0] sm:$0xff]
        %v1724 = vld [vmem:[%s181 + $0xc8] sm:$0xff]
        %v1725 = vld [vmem:[%s181 + $0xd0] sm:$0xff]
        %v1726 = vld [vmem:[%s181 + $0xd8] sm:$0xff]
        %v1727 = vld [vmem:[%s181 + $0x180] sm:$0xff]
        %v1728 = vld [vmem:[%s181 + $0x188] sm:$0xff]
        %v1729 = vld [vmem:[%s181 + $0x190] sm:$0xff]
        %v1730 = vld [vmem:[%s181 + $0x198] sm:$0xff]
        %v1731 = vld [vmem:[%s181 + $0x240] sm:$0xff]
        %v1732 = vld [vmem:[%s181 + $0x248] sm:$0xff]
        %v1733 = vld [vmem:[%s181 + $0x250] sm:$0xff]
        %v1734 = vld [vmem:[%s181 + $0x258] sm:$0xff]
        %v1735 = vmul.f32 %v1719, %v1703
        %v1736 = vmul.f32 %v1720, %v1704
        %v1737 = vmul.f32 %v1721, %v1705
        %v1738 = vmul.f32 %v1722, %v1706
        %v1739 = vmul.f32 %v1723, %v1707
        %v1740 = vmul.f32 %v1724, %v1708
        %v1741 = vmul.f32 %v1725, %v1709
        %v1742 = vmul.f32 %v1726, %v1710
        %v1743 = vmul.f32 %v1727, %v1711
        %v1744 = vmul.f32 %v1728, %v1712
        %v1745 = vmul.f32 %v1729, %v1713
        %v1746 = vmul.f32 %v1730, %v1714
        %v1747 = vmul.f32 %v1731, %v1715
        %v1748 = vmul.f32 %v1732, %v1716
        %v1749 = vmul.f32 %v1733, %v1717
        %v1750 = vmul.f32 %v1734, %v1718
        %v1751 = vadd.f32 %v1735, %v1399
        %v1752 = vadd.f32 %v1736, %v1400
        %v1753 = vadd.f32 %v1737, %v1401
        %v1754 = vadd.f32 %v1738, %v1402
        %v1755 = vadd.f32 %v1739, %v1403
        %v1756 = vadd.f32 %v1740, %v1404
        %v1757 = vadd.f32 %v1741, %v1405
        %v1758 = vadd.f32 %v1742, %v1406
        %v1759 = vadd.f32 %v1743, %v1407
        %v1760 = vadd.f32 %v1744, %v1408
        %v1761 = vadd.f32 %v1745, %v1409
        %v1762 = vadd.f32 %v1746, %v1410
        %v1763 = vadd.f32 %v1747, %v1411
        %v1764 = vadd.f32 %v1748, %v1412
        %v1765 = vadd.f32 %v1749, %v1413
        %v1766 = vadd.f32 %v1750, %v1414
        %v1767 = vmul.f32 %v1751, %v1477
        %v1768 = vmul.f32 %v1752, %v1492
        %v1769 = vmul.f32 %v1753, %v1507
        %v1770 = vmul.f32 %v1754, %v1522
        %v1771 = vmul.f32 %v1755, %v1537
        %v1772 = vmul.f32 %v1756, %v1552
        %v1773 = vmul.f32 %v1757, %v1567
        %v1774 = vmul.f32 %v1758, %v1582
        %v1775 = vmul.f32 %v1759, %v1597
        %v1776 = vmul.f32 %v1760, %v1612
        %v1777 = vmul.f32 %v1761, %v1627
        %v1778 = vmul.f32 %v1762, %v1642
        %v1779 = vmul.f32 %v1763, %v1657
        %v1780 = vmul.f32 %v1764, %v1672
        %v1781 = vmul.f32 %v1765, %v1687
        %v1782 = vmul.f32 %v1766, %v1702
        %v1783 = vmul.f32 %v1719, 0.999
        %v1784 = vmul.f32 %v1720, 0.999
        %v1785 = vmul.f32 %v1721, 0.999
        %v1786 = vmul.f32 %v1722, 0.999
        %v1787 = vmul.f32 %v1723, 0.999
        %v1788 = vmul.f32 %v1724, 0.999
        %v1789 = vmul.f32 %v1725, 0.999
        %v1790 = vmul.f32 %v1726, 0.999
        %v1791 = vmul.f32 %v1727, 0.999
        %v1792 = vmul.f32 %v1728, 0.999
        %v1793 = vmul.f32 %v1729, 0.999
        %v1794 = vmul.f32 %v1730, 0.999
        %v1795 = vmul.f32 %v1731, 0.999
        %v1796 = vmul.f32 %v1732, 0.999
        %v1797 = vmul.f32 %v1733, 0.999
        %v1798 = vmul.f32 %v1734, 0.999
        %v1799 = vmul.f32 %v1399, 0.001
        %v1800 = vmul.f32 %v1400, 0.001
        %v1801 = vmul.f32 %v1401, 0.001
        %v1802 = vmul.f32 %v1402, 0.001
        %v1803 = vmul.f32 %v1403, 0.001
        %v1804 = vmul.f32 %v1404, 0.001
        %v1805 = vmul.f32 %v1405, 0.001
        %v1806 = vmul.f32 %v1406, 0.001
        %v1807 = vmul.f32 %v1407, 0.001
        %v1808 = vmul.f32 %v1408, 0.001
        %v1809 = vmul.f32 %v1409, 0.001
        %v1810 = vmul.f32 %v1410, 0.001
        %v1811 = vmul.f32 %v1411, 0.001
        %v1812 = vmul.f32 %v1412, 0.001
        %v1813 = vmul.f32 %v1413, 0.001
        %v1814 = vmul.f32 %v1414, 0.001
        %v1815 = vadd.f32 %v1783, %v1799
        %v1816 = vadd.f32 %v1784, %v1800
        %v1817 = vadd.f32 %v1785, %v1801
        %v1818 = vadd.f32 %v1786, %v1802
        %v1819 = vadd.f32 %v1787, %v1803
        %v1820 = vadd.f32 %v1788, %v1804
        %v1821 = vadd.f32 %v1789, %v1805
        %v1822 = vadd.f32 %v1790, %v1806
        %v1823 = vadd.f32 %v1791, %v1807
        %v1824 = vadd.f32 %v1792, %v1808
        %v1825 = vadd.f32 %v1793, %v1809
        %v1826 = vadd.f32 %v1794, %v1810
        %v1827 = vadd.f32 %v1795, %v1811
        %v1828 = vadd.f32 %v1796, %v1812
        %v1829 = vadd.f32 %v1797, %v1813
        %v1830 = vadd.f32 %v1798, %v1814
        %v1831 = vsel %vm1431, %v1767, %v1815
        %v1832 = vsel %vm1432, %v1768, %v1816
        %v1833 = vsel %vm1433, %v1769, %v1817
        %v1834 = vsel %vm1434, %v1770, %v1818
        %v1835 = vsel %vm1435, %v1771, %v1819
        %v1836 = vsel %vm1436, %v1772, %v1820
        %v1837 = vsel %vm1437, %v1773, %v1821
        %v1838 = vsel %vm1438, %v1774, %v1822
        %v1839 = vsel %vm1439, %v1775, %v1823
        %v1840 = vsel %vm1440, %v1776, %v1824
        %v1841 = vsel %vm1441, %v1777, %v1825
        %v1842 = vsel %vm1442, %v1778, %v1826
        %v1843 = vsel %vm1443, %v1779, %v1827
        %v1844 = vsel %vm1444, %v1780, %v1828
        %v1845 = vsel %vm1445, %v1781, %v1829
        %v1846 = vsel %vm1446, %v1782, %v1830
        %v1847 = vsel %vm228, %v1831, %v1719
        %v1848 = vsel %vm229, %v1832, %v1720
        %v1849 = vsel %vm230, %v1833, %v1721
        %v1850 = vsel %vm231, %v1834, %v1722
        %v1851 = vsel %vm232, %v1835, %v1723
        %v1852 = vsel %vm233, %v1836, %v1724
        %v1853 = vsel %vm234, %v1837, %v1725
        %v1854 = vsel %vm235, %v1838, %v1726
        %v1855 = vsel %vm236, %v1839, %v1727
        %v1856 = vsel %vm237, %v1840, %v1728
        %v1857 = vsel %vm238, %v1841, %v1729
        %v1858 = vsel %vm239, %v1842, %v1730
        %v1859 = vsel %vm240, %v1843, %v1731
        %v1860 = vsel %vm241, %v1844, %v1732
        %v1861 = vsel %vm242, %v1845, %v1733
        %v1862 = vsel %vm243, %v1846, %v1734
        %s1863 = scalar_lea.vmem %s181, 32 [#allocation5]
        %v1864 = vld [vmem:[%s1863] sm:$0xff]
        %v1865 = vld [vmem:[%s1863 + $0x8] sm:$0xff]
        %v1866 = vld [vmem:[%s1863 + $0x10] sm:$0xff]
        %v1867 = vld [vmem:[%s1863 + $0x18] sm:$0xff]
        %v1868 = vld [vmem:[%s1863 + $0xc0] sm:$0xff]
        %v1869 = vld [vmem:[%s1863 + $0xc8] sm:$0xff]
        %v1870 = vld [vmem:[%s1863 + $0xd0] sm:$0xff]
        %v1871 = vld [vmem:[%s1863 + $0xd8] sm:$0xff]
        %v1872 = vld [vmem:[%s1863 + $0x180] sm:$0xff]
        %v1873 = vld [vmem:[%s1863 + $0x188] sm:$0xff]
        %v1874 = vld [vmem:[%s1863 + $0x190] sm:$0xff]
        %v1875 = vld [vmem:[%s1863 + $0x198] sm:$0xff]
        %v1876 = vld [vmem:[%s1863 + $0x240] sm:$0xff]
        %v1877 = vld [vmem:[%s1863 + $0x248] sm:$0xff]
        %v1878 = vld [vmem:[%s1863 + $0x250] sm:$0xff]
        %v1879 = vld [vmem:[%s1863 + $0x258] sm:$0xff]
        %v1880 = vmul.f32 %v1864, %v1703
        %v1881 = vmul.f32 %v1865, %v1704
        %v1882 = vmul.f32 %v1866, %v1705
        %v1883 = vmul.f32 %v1867, %v1706
        %v1884 = vmul.f32 %v1868, %v1707
        %v1885 = vmul.f32 %v1869, %v1708
        %v1886 = vmul.f32 %v1870, %v1709
        %v1887 = vmul.f32 %v1871, %v1710
        %v1888 = vmul.f32 %v1872, %v1711
        %v1889 = vmul.f32 %v1873, %v1712
        %v1890 = vmul.f32 %v1874, %v1713
        %v1891 = vmul.f32 %v1875, %v1714
        %v1892 = vmul.f32 %v1876, %v1715
        %v1893 = vmul.f32 %v1877, %v1716
        %v1894 = vmul.f32 %v1878, %v1717
        %v1895 = vmul.f32 %v1879, %v1718
        %v1896 = vadd.f32 %v1880, %v1415
        %v1897 = vadd.f32 %v1881, %v1416
        %v1898 = vadd.f32 %v1882, %v1417
        %v1899 = vadd.f32 %v1883, %v1418
        %v1900 = vadd.f32 %v1884, %v1419
        %v1901 = vadd.f32 %v1885, %v1420
        %v1902 = vadd.f32 %v1886, %v1421
        %v1903 = vadd.f32 %v1887, %v1422
        %v1904 = vadd.f32 %v1888, %v1423
        %v1905 = vadd.f32 %v1889, %v1424
        %v1906 = vadd.f32 %v1890, %v1425
        %v1907 = vadd.f32 %v1891, %v1426
        %v1908 = vadd.f32 %v1892, %v1427
        %v1909 = vadd.f32 %v1893, %v1428
        %v1910 = vadd.f32 %v1894, %v1429
        %v1911 = vadd.f32 %v1895, %v1430
        %v1912 = vmul.f32 %v1896, %v1477
        %v1913 = vmul.f32 %v1897, %v1492
        %v1914 = vmul.f32 %v1898, %v1507
        %v1915 = vmul.f32 %v1899, %v1522
        %v1916 = vmul.f32 %v1900, %v1537
        %v1917 = vmul.f32 %v1901, %v1552
        %v1918 = vmul.f32 %v1902, %v1567
        %v1919 = vmul.f32 %v1903, %v1582
        %v1920 = vmul.f32 %v1904, %v1597
        %v1921 = vmul.f32 %v1905, %v1612
        %v1922 = vmul.f32 %v1906, %v1627
        %v1923 = vmul.f32 %v1907, %v1642
        %v1924 = vmul.f32 %v1908, %v1657
        %v1925 = vmul.f32 %v1909, %v1672
        %v1926 = vmul.f32 %v1910, %v1687
        %v1927 = vmul.f32 %v1911, %v1702
        %v1928 = vmul.f32 %v1864, 0.999
        %v1929 = vmul.f32 %v1865, 0.999
        %v1930 = vmul.f32 %v1866, 0.999
        %v1931 = vmul.f32 %v1867, 0.999
        %v1932 = vmul.f32 %v1868, 0.999
        %v1933 = vmul.f32 %v1869, 0.999
        %v1934 = vmul.f32 %v1870, 0.999
        %v1935 = vmul.f32 %v1871, 0.999
        %v1936 = vmul.f32 %v1872, 0.999
        %v1937 = vmul.f32 %v1873, 0.999
        %v1938 = vmul.f32 %v1874, 0.999
        %v1939 = vmul.f32 %v1875, 0.999
        %v1940 = vmul.f32 %v1876, 0.999
        %v1941 = vmul.f32 %v1877, 0.999
        %v1942 = vmul.f32 %v1878, 0.999
        %v1943 = vmul.f32 %v1879, 0.999
        %v1944 = vmul.f32 %v1415, 0.001
        %v1945 = vmul.f32 %v1416, 0.001
        %v1946 = vmul.f32 %v1417, 0.001
        %v1947 = vmul.f32 %v1418, 0.001
        %v1948 = vmul.f32 %v1419, 0.001
        %v1949 = vmul.f32 %v1420, 0.001
        %v1950 = vmul.f32 %v1421, 0.001
        %v1951 = vmul.f32 %v1422, 0.001
        %v1952 = vmul.f32 %v1423, 0.001
        %v1953 = vmul.f32 %v1424, 0.001
        %v1954 = vmul.f32 %v1425, 0.001
        %v1955 = vmul.f32 %v1426, 0.001
        %v1956 = vmul.f32 %v1427, 0.001
        %v1957 = vmul.f32 %v1428, 0.001
        %v1958 = vmul.f32 %v1429, 0.001
        %v1959 = vmul.f32 %v1430, 0.001
        %v1960 = vadd.f32 %v1928, %v1944
        %v1961 = vadd.f32 %v1929, %v1945
        %v1962 = vadd.f32 %v1930, %v1946
        %v1963 = vadd.f32 %v1931, %v1947
        %v1964 = vadd.f32 %v1932, %v1948
        %v1965 = vadd.f32 %v1933, %v1949
        %v1966 = vadd.f32 %v1934, %v1950
        %v1967 = vadd.f32 %v1935, %v1951
        %v1968 = vadd.f32 %v1936, %v1952
        %v1969 = vadd.f32 %v1937, %v1953
        %v1970 = vadd.f32 %v1938, %v1954
        %v1971 = vadd.f32 %v1939, %v1955
        %v1972 = vadd.f32 %v1940, %v1956
        %v1973 = vadd.f32 %v1941, %v1957
        %v1974 = vadd.f32 %v1942, %v1958
        %v1975 = vadd.f32 %v1943, %v1959
        %v1976 = vsel %vm1431, %v1912, %v1960
        %v1977 = vsel %vm1432, %v1913, %v1961
        %v1978 = vsel %vm1433, %v1914, %v1962
        %v1979 = vsel %vm1434, %v1915, %v1963
        %v1980 = vsel %vm1435, %v1916, %v1964
        %v1981 = vsel %vm1436, %v1917, %v1965
        %v1982 = vsel %vm1437, %v1918, %v1966
        %v1983 = vsel %vm1438, %v1919, %v1967
        %v1984 = vsel %vm1439, %v1920, %v1968
        %v1985 = vsel %vm1440, %v1921, %v1969
        %v1986 = vsel %vm1441, %v1922, %v1970
        %v1987 = vsel %vm1442, %v1923, %v1971
        %v1988 = vsel %vm1443, %v1924, %v1972
        %v1989 = vsel %vm1444, %v1925, %v1973
        %v1990 = vsel %vm1445, %v1926, %v1974
        %v1991 = vsel %vm1446, %v1927, %v1975
        %v1992 = vsel %vm228, %v1976, %v1864
        %v1993 = vsel %vm229, %v1977, %v1865
        %v1994 = vsel %vm230, %v1978, %v1866
        %v1995 = vsel %vm231, %v1979, %v1867
        %v1996 = vsel %vm232, %v1980, %v1868
        %v1997 = vsel %vm233, %v1981, %v1869
        %v1998 = vsel %vm234, %v1982, %v1870
        %v1999 = vsel %vm235, %v1983, %v1871
        %v2000 = vsel %vm236, %v1984, %v1872
        %v2001 = vsel %vm237, %v1985, %v1873
        %v2002 = vsel %vm238, %v1986, %v1874
        %v2003 = vsel %vm239, %v1987, %v1875
        %v2004 = vsel %vm240, %v1988, %v1876
        %v2005 = vsel %vm241, %v1989, %v1877
        %v2006 = vsel %vm242, %v1990, %v1878
        %v2007 = vsel %vm243, %v1991, %v1879
        %v2008 = vmul.f32 %v1847, %v1847
        %v2009 = vmul.f32 %v1848, %v1848
        %v2010 = vmul.f32 %v1849, %v1849
        %v2011 = vmul.f32 %v1850, %v1850
        %v2012 = vmul.f32 %v1851, %v1851
        %v2013 = vmul.f32 %v1852, %v1852
        %v2014 = vmul.f32 %v1853, %v1853
        %v2015 = vmul.f32 %v1854, %v1854
        %v2016 = vmul.f32 %v1855, %v1855
        %v2017 = vmul.f32 %v1856, %v1856
        %v2018 = vmul.f32 %v1857, %v1857
        %v2019 = vmul.f32 %v1858, %v1858
        %v2020 = vmul.f32 %v1859, %v1859
        %v2021 = vmul.f32 %v1860, %v1860
        %v2022 = vmul.f32 %v1861, %v1861
        %v2023 = vmul.f32 %v1862, %v1862
        %v2024 = vsub.f32 %v1992, %v2008
        %v2025 = vsub.f32 %v1993, %v2009
        %v2026 = vsub.f32 %v1994, %v2010
        %v2027 = vsub.f32 %v1995, %v2011
        %v2028 = vsub.f32 %v1996, %v2012
        %v2029 = vsub.f32 %v1997, %v2013
        %v2030 = vsub.f32 %v1998, %v2014
        %v2031 = vsub.f32 %v1999, %v2015
        %v2032 = vsub.f32 %v2000, %v2016
        %v2033 = vsub.f32 %v2001, %v2017
        %v2034 = vsub.f32 %v2002, %v2018
        %v2035 = vsub.f32 %v2003, %v2019
        %v2036 = vsub.f32 %v2004, %v2020
        %v2037 = vsub.f32 %v2005, %v2021
        %v2038 = vsub.f32 %v2006, %v2022
        %v2039 = vsub.f32 %v2007, %v2023
        %v2040 = vmax.f32 %v2024, 0.0
        %v2041 = vmax.f32 %v2025, 0.0
        %v2042 = vmax.f32 %v2026, 0.0
        %v2043 = vmax.f32 %v2027, 0.0
        %v2044 = vmax.f32 %v2028, 0.0
        %v2045 = vmax.f32 %v2029, 0.0
        %v2046 = vmax.f32 %v2030, 0.0
        %v2047 = vmax.f32 %v2031, 0.0
        %v2048 = vmax.f32 %v2032, 0.0
        %v2049 = vmax.f32 %v2033, 0.0
        %v2050 = vmax.f32 %v2034, 0.0
        %v2051 = vmax.f32 %v2035, 0.0
        %v2052 = vmax.f32 %v2036, 0.0
        %v2053 = vmax.f32 %v2037, 0.0
        %v2054 = vmax.f32 %v2038, 0.0
        %v2055 = vmax.f32 %v2039, 0.0
        %2056 = vst [vmem:[%s207] sm:$0xff] %v1847
        %2057 = vst [vmem:[%s207 + $0x8] sm:$0xff] %v1848
        %2058 = vst [vmem:[%s207 + $0x10] sm:$0xff] %v1849
        %2059 = vst [vmem:[%s207 + $0x18] sm:$0xff] %v1850
        %2060 = vst [vmem:[%s207 + $0xc0] sm:$0xff] %v1851
        %2061 = vst [vmem:[%s207 + $0xc8] sm:$0xff] %v1852
        %2062 = vst [vmem:[%s207 + $0xd0] sm:$0xff] %v1853
        %2063 = vst [vmem:[%s207 + $0xd8] sm:$0xff] %v1854
        %2064 = vst [vmem:[%s207 + $0x180] sm:$0xff] %v1855
        %2065 = vst [vmem:[%s207 + $0x188] sm:$0xff] %v1856
        %2066 = vst [vmem:[%s207 + $0x190] sm:$0xff] %v1857
        %2067 = vst [vmem:[%s207 + $0x198] sm:$0xff] %v1858
        %2068 = vst [vmem:[%s207 + $0x240] sm:$0xff] %v1859
        %2069 = vst [vmem:[%s207 + $0x248] sm:$0xff] %v1860
        %2070 = vst [vmem:[%s207 + $0x250] sm:$0xff] %v1861
        %2071 = vst [vmem:[%s207 + $0x258] sm:$0xff] %v1862
        %s2072 = scalar_lea.vmem %s207, 32 [#allocation7]
        %2073 = vst [vmem:[%s2072] sm:$0xff] %v1992
        %2074 = vst [vmem:[%s2072 + $0x8] sm:$0xff] %v1993
        %2075 = vst [vmem:[%s2072 + $0x10] sm:$0xff] %v1994
        %2076 = vst [vmem:[%s2072 + $0x18] sm:$0xff] %v1995
        %2077 = vst [vmem:[%s2072 + $0xc0] sm:$0xff] %v1996
        %2078 = vst [vmem:[%s2072 + $0xc8] sm:$0xff] %v1997
        %2079 = vst [vmem:[%s2072 + $0xd0] sm:$0xff] %v1998
        %2080 = vst [vmem:[%s2072 + $0xd8] sm:$0xff] %v1999
        %2081 = vst [vmem:[%s2072 + $0x180] sm:$0xff] %v2000
        %2082 = vst [vmem:[%s2072 + $0x188] sm:$0xff] %v2001
        %2083 = vst [vmem:[%s2072 + $0x190] sm:$0xff] %v2002
        %2084 = vst [vmem:[%s2072 + $0x198] sm:$0xff] %v2003
        %2085 = vst [vmem:[%s2072 + $0x240] sm:$0xff] %v2004
        %2086 = vst [vmem:[%s2072 + $0x248] sm:$0xff] %v2005
        %2087 = vst [vmem:[%s2072 + $0x250] sm:$0xff] %v2006
        %2088 = vst [vmem:[%s2072 + $0x258] sm:$0xff] %v2007
        %s2089 = scalar_lea.vmem %s207, 128 [#allocation7]
        %2090 = vst [vmem:[%s2089] sm:$0xff] %v2040
        %2091 = vst [vmem:[%s2089 + $0x8] sm:$0xff] %v2041
        %2092 = vst [vmem:[%s2089 + $0x10] sm:$0xff] %v2042
        %2093 = vst [vmem:[%s2089 + $0x18] sm:$0xff] %v2043
        %2094 = vst [vmem:[%s2089 + $0xc0] sm:$0xff] %v2044
        %2095 = vst [vmem:[%s2089 + $0xc8] sm:$0xff] %v2045
        %2096 = vst [vmem:[%s2089 + $0xd0] sm:$0xff] %v2046
        %2097 = vst [vmem:[%s2089 + $0xd8] sm:$0xff] %v2047
        %2098 = vst [vmem:[%s2089 + $0x180] sm:$0xff] %v2048
        %2099 = vst [vmem:[%s2089 + $0x188] sm:$0xff] %v2049
        %2100 = vst [vmem:[%s2089 + $0x190] sm:$0xff] %v2050
        %2101 = vst [vmem:[%s2089 + $0x198] sm:$0xff] %v2051
        %2102 = vst [vmem:[%s2089 + $0x240] sm:$0xff] %v2052
        %2103 = vst [vmem:[%s2089 + $0x248] sm:$0xff] %v2053
        %2104 = vst [vmem:[%s2089 + $0x250] sm:$0xff] %v2054
        %2105 = vst [vmem:[%s2089 + $0x258] sm:$0xff] %v2055
        %v2106 = vrsqrt.pop %v2040
        %v2107 = vmul.f32 %v2106, %v2040
        %v2108 = vmul.f32 %v2107, %v2106
        %v2109 = vmul.f32 0.5, %v2108
        %v2110 = vsub.f32 1.5, %v2109
        %v2111 = vmul.f32 %v2106, %v2110
        %v2112 = vmul.f32 %v2040, %v2111
        %vm2113 = vcmp.eq.f32.partialorder %v2040, inf
        %v2114 = vsel %vm2113, %v2040, %v2112
        %vm2115 = vcmp.eq.f32.partialorder %v2040, 0.0
        %v2116 = vand.u32 %v2040, 2147483648
        %v2117 = vsel %vm2115, %v2116, %v2114
        %v2118 = vrsqrt.pop %v2041
        %v2119 = vmul.f32 %v2118, %v2041
        %v2120 = vmul.f32 %v2119, %v2118
        %v2121 = vmul.f32 0.5, %v2120
        %v2122 = vsub.f32 1.5, %v2121
        %v2123 = vmul.f32 %v2118, %v2122
        %v2124 = vmul.f32 %v2041, %v2123
        %vm2125 = vcmp.eq.f32.partialorder %v2041, inf
        %v2126 = vsel %vm2125, %v2041, %v2124
        %vm2127 = vcmp.eq.f32.partialorder %v2041, 0.0
        %v2128 = vand.u32 %v2041, 2147483648
        %v2129 = vsel %vm2127, %v2128, %v2126
        %v2130 = vrsqrt.pop %v2042
        %v2131 = vmul.f32 %v2130, %v2042
        %v2132 = vmul.f32 %v2131, %v2130
        %v2133 = vmul.f32 0.5, %v2132
        %v2134 = vsub.f32 1.5, %v2133
        %v2135 = vmul.f32 %v2130, %v2134
        %v2136 = vmul.f32 %v2042, %v2135
        %vm2137 = vcmp.eq.f32.partialorder %v2042, inf
        %v2138 = vsel %vm2137, %v2042, %v2136
        %vm2139 = vcmp.eq.f32.partialorder %v2042, 0.0
        %v2140 = vand.u32 %v2042, 2147483648
        %v2141 = vsel %vm2139, %v2140, %v2138
        %v2142 = vrsqrt.pop %v2043
        %v2143 = vmul.f32 %v2142, %v2043
        %v2144 = vmul.f32 %v2143, %v2142
        %v2145 = vmul.f32 0.5, %v2144
        %v2146 = vsub.f32 1.5, %v2145
        %v2147 = vmul.f32 %v2142, %v2146
        %v2148 = vmul.f32 %v2043, %v2147
        %vm2149 = vcmp.eq.f32.partialorder %v2043, inf
        %v2150 = vsel %vm2149, %v2043, %v2148
        %vm2151 = vcmp.eq.f32.partialorder %v2043, 0.0
        %v2152 = vand.u32 %v2043, 2147483648
        %v2153 = vsel %vm2151, %v2152, %v2150
        %v2154 = vrsqrt.pop %v2044
        %v2155 = vmul.f32 %v2154, %v2044
        %v2156 = vmul.f32 %v2155, %v2154
        %v2157 = vmul.f32 0.5, %v2156
        %v2158 = vsub.f32 1.5, %v2157
        %v2159 = vmul.f32 %v2154, %v2158
        %v2160 = vmul.f32 %v2044, %v2159
        %vm2161 = vcmp.eq.f32.partialorder %v2044, inf
        %v2162 = vsel %vm2161, %v2044, %v2160
        %vm2163 = vcmp.eq.f32.partialorder %v2044, 0.0
        %v2164 = vand.u32 %v2044, 2147483648
        %v2165 = vsel %vm2163, %v2164, %v2162
        %v2166 = vrsqrt.pop %v2045
        %v2167 = vmul.f32 %v2166, %v2045
        %v2168 = vmul.f32 %v2167, %v2166
        %v2169 = vmul.f32 0.5, %v2168
        %v2170 = vsub.f32 1.5, %v2169
        %v2171 = vmul.f32 %v2166, %v2170
        %v2172 = vmul.f32 %v2045, %v2171
        %vm2173 = vcmp.eq.f32.partialorder %v2045, inf
        %v2174 = vsel %vm2173, %v2045, %v2172
        %vm2175 = vcmp.eq.f32.partialorder %v2045, 0.0
        %v2176 = vand.u32 %v2045, 2147483648
        %v2177 = vsel %vm2175, %v2176, %v2174
        %v2178 = vrsqrt.pop %v2046
        %v2179 = vmul.f32 %v2178, %v2046
        %v2180 = vmul.f32 %v2179, %v2178
        %v2181 = vmul.f32 0.5, %v2180
        %v2182 = vsub.f32 1.5, %v2181
        %v2183 = vmul.f32 %v2178, %v2182
        %v2184 = vmul.f32 %v2046, %v2183
        %vm2185 = vcmp.eq.f32.partialorder %v2046, inf
        %v2186 = vsel %vm2185, %v2046, %v2184
        %vm2187 = vcmp.eq.f32.partialorder %v2046, 0.0
        %v2188 = vand.u32 %v2046, 2147483648
        %v2189 = vsel %vm2187, %v2188, %v2186
        %v2190 = vrsqrt.pop %v2047
        %v2191 = vmul.f32 %v2190, %v2047
        %v2192 = vmul.f32 %v2191, %v2190
        %v2193 = vmul.f32 0.5, %v2192
        %v2194 = vsub.f32 1.5, %v2193
        %v2195 = vmul.f32 %v2190, %v2194
        %v2196 = vmul.f32 %v2047, %v2195
        %vm2197 = vcmp.eq.f32.partialorder %v2047, inf
        %v2198 = vsel %vm2197, %v2047, %v2196
        %vm2199 = vcmp.eq.f32.partialorder %v2047, 0.0
        %v2200 = vand.u32 %v2047, 2147483648
        %v2201 = vsel %vm2199, %v2200, %v2198
        %v2202 = vrsqrt.pop %v2048
        %v2203 = vmul.f32 %v2202, %v2048
        %v2204 = vmul.f32 %v2203, %v2202
        %v2205 = vmul.f32 0.5, %v2204
        %v2206 = vsub.f32 1.5, %v2205
        %v2207 = vmul.f32 %v2202, %v2206
        %v2208 = vmul.f32 %v2048, %v2207
        %vm2209 = vcmp.eq.f32.partialorder %v2048, inf
        %v2210 = vsel %vm2209, %v2048, %v2208
        %vm2211 = vcmp.eq.f32.partialorder %v2048, 0.0
        %v2212 = vand.u32 %v2048, 2147483648
        %v2213 = vsel %vm2211, %v2212, %v2210
        %v2214 = vrsqrt.pop %v2049
        %v2215 = vmul.f32 %v2214, %v2049
        %v2216 = vmul.f32 %v2215, %v2214
        %v2217 = vmul.f32 0.5, %v2216
        %v2218 = vsub.f32 1.5, %v2217
        %v2219 = vmul.f32 %v2214, %v2218
        %v2220 = vmul.f32 %v2049, %v2219
        %vm2221 = vcmp.eq.f32.partialorder %v2049, inf
        %v2222 = vsel %vm2221, %v2049, %v2220
        %vm2223 = vcmp.eq.f32.partialorder %v2049, 0.0
        %v2224 = vand.u32 %v2049, 2147483648
        %v2225 = vsel %vm2223, %v2224, %v2222
        %v2226 = vrsqrt.pop %v2050
        %v2227 = vmul.f32 %v2226, %v2050
        %v2228 = vmul.f32 %v2227, %v2226
        %v2229 = vmul.f32 0.5, %v2228
        %v2230 = vsub.f32 1.5, %v2229
        %v2231 = vmul.f32 %v2226, %v2230
        %v2232 = vmul.f32 %v2050, %v2231
        %vm2233 = vcmp.eq.f32.partialorder %v2050, inf
        %v2234 = vsel %vm2233, %v2050, %v2232
        %vm2235 = vcmp.eq.f32.partialorder %v2050, 0.0
        %v2236 = vand.u32 %v2050, 2147483648
        %v2237 = vsel %vm2235, %v2236, %v2234
        %v2238 = vrsqrt.pop %v2051
        %v2239 = vmul.f32 %v2238, %v2051
        %v2240 = vmul.f32 %v2239, %v2238
        %v2241 = vmul.f32 0.5, %v2240
        %v2242 = vsub.f32 1.5, %v2241
        %v2243 = vmul.f32 %v2238, %v2242
        %v2244 = vmul.f32 %v2051, %v2243
        %vm2245 = vcmp.eq.f32.partialorder %v2051, inf
        %v2246 = vsel %vm2245, %v2051, %v2244
        %vm2247 = vcmp.eq.f32.partialorder %v2051, 0.0
        %v2248 = vand.u32 %v2051, 2147483648
        %v2249 = vsel %vm2247, %v2248, %v2246
        %v2250 = vrsqrt.pop %v2052
        %v2251 = vmul.f32 %v2250, %v2052
        %v2252 = vmul.f32 %v2251, %v2250
        %v2253 = vmul.f32 0.5, %v2252
        %v2254 = vsub.f32 1.5, %v2253
        %v2255 = vmul.f32 %v2250, %v2254
        %v2256 = vmul.f32 %v2052, %v2255
        %vm2257 = vcmp.eq.f32.partialorder %v2052, inf
        %v2258 = vsel %vm2257, %v2052, %v2256
        %vm2259 = vcmp.eq.f32.partialorder %v2052, 0.0
        %v2260 = vand.u32 %v2052, 2147483648
        %v2261 = vsel %vm2259, %v2260, %v2258
        %v2262 = vrsqrt.pop %v2053
        %v2263 = vmul.f32 %v2262, %v2053
        %v2264 = vmul.f32 %v2263, %v2262
        %v2265 = vmul.f32 0.5, %v2264
        %v2266 = vsub.f32 1.5, %v2265
        %v2267 = vmul.f32 %v2262, %v2266
        %v2268 = vmul.f32 %v2053, %v2267
        %vm2269 = vcmp.eq.f32.partialorder %v2053, inf
        %v2270 = vsel %vm2269, %v2053, %v2268
        %vm2271 = vcmp.eq.f32.partialorder %v2053, 0.0
        %v2272 = vand.u32 %v2053, 2147483648
        %v2273 = vsel %vm2271, %v2272, %v2270
        %v2274 = vrsqrt.pop %v2054
        %v2275 = vmul.f32 %v2274, %v2054
        %v2276 = vmul.f32 %v2275, %v2274
        %v2277 = vmul.f32 0.5, %v2276
        %v2278 = vsub.f32 1.5, %v2277
        %v2279 = vmul.f32 %v2274, %v2278
        %v2280 = vmul.f32 %v2054, %v2279
        %vm2281 = vcmp.eq.f32.partialorder %v2054, inf
        %v2282 = vsel %vm2281, %v2054, %v2280
        %vm2283 = vcmp.eq.f32.partialorder %v2054, 0.0
        %v2284 = vand.u32 %v2054, 2147483648
        %v2285 = vsel %vm2283, %v2284, %v2282
        %v2286 = vrsqrt.pop %v2055
        %v2287 = vmul.f32 %v2286, %v2055
        %v2288 = vmul.f32 %v2287, %v2286
        %v2289 = vmul.f32 0.5, %v2288
        %v2290 = vsub.f32 1.5, %v2289
        %v2291 = vmul.f32 %v2286, %v2290
        %v2292 = vmul.f32 %v2055, %v2291
        %vm2293 = vcmp.eq.f32.partialorder %v2055, inf
        %v2294 = vsel %vm2293, %v2055, %v2292
        %vm2295 = vcmp.eq.f32.partialorder %v2055, 0.0
        %v2296 = vand.u32 %v2055, 2147483648
        %v2297 = vsel %vm2295, %v2296, %v2294
        %s2298 = scalar_lea.vmem %s207, 160 [#allocation7]
        %2299 = vst [vmem:[%s2298] sm:$0xff] %v2117
        %2300 = vst [vmem:[%s2298 + $0x8] sm:$0xff] %v2129
        %2301 = vst [vmem:[%s2298 + $0x10] sm:$0xff] %v2141
        %2302 = vst [vmem:[%s2298 + $0x18] sm:$0xff] %v2153
        %2303 = vst [vmem:[%s2298 + $0xc0] sm:$0xff] %v2165
        %2304 = vst [vmem:[%s2298 + $0xc8] sm:$0xff] %v2177
        %2305 = vst [vmem:[%s2298 + $0xd0] sm:$0xff] %v2189
        %2306 = vst [vmem:[%s2298 + $0xd8] sm:$0xff] %v2201
        %2307 = vst [vmem:[%s2298 + $0x180] sm:$0xff] %v2213
        %2308 = vst [vmem:[%s2298 + $0x188] sm:$0xff] %v2225
        %2309 = vst [vmem:[%s2298 + $0x190] sm:$0xff] %v2237
        %2310 = vst [vmem:[%s2298 + $0x198] sm:$0xff] %v2249
        %2311 = vst [vmem:[%s2298 + $0x240] sm:$0xff] %v2261
        %2312 = vst [vmem:[%s2298 + $0x248] sm:$0xff] %v2273
        %2313 = vst [vmem:[%s2298 + $0x250] sm:$0xff] %v2285
        %2314 = vst [vmem:[%s2298 + $0x258] sm:$0xff] %v2297
        %s2315 = sand.u32 %s82, 1
        %s2316 = scalar_lea.sflag [#allocation4], %s2315
        %s2317 = sand.u32 %s82, 1
        %s2318 = smul.addr %s2317, 768
        %s2319 = scalar_lea.vmem [#allocation7], %s2318
        // Predicated region
        $region37: #{tpu_custom_call.1} parent=27 // pred_check
          %p2320 = pneg %p92
        $region38: #{tpu_custom_call.1} parent=27 // pred_check_branch
          %2322 = sbr.rel (%p2320) target = $region40
        $region39: #{tpu_custom_call.1} parent=27 // pred_region
          %s2323 = smul.u32 4, %s22
          %2325 = vsyncadd %s2316, 0
          %s2326 = smul.addr %s2323, 24
          %s2327 = smul.addr %s2326, 8
          %s2328 = scalar_lea.hbm %s2, %s2327
          %s2329 = sshll.u32 %s2319, 4
          %s2330 = int_to_ptr.vmem [resolvable:$true] %s2329
          %s2331 = sshll.u32 %s2328, 4
          %s2332 = int_to_ptr.hbm [resolvable:$true] %s2331
          %2337 = dma.vmem_to_hbm [thread:$0]  %s2330, 12288, %s2332, %s2316, 128, 128, 8
        $region40: #{tpu_custom_call.1} parent=27 // pred_fallthru
          _
      $region28: #{tpu_custom_call.1} parent=5 // pred_fallthru
        _
      %p2338 = scmp.le.s32.totalorder 2, %s17
      // Predicated region
      $region41: #{tpu_custom_call.1} parent=5 // pred_check
        %p2339 = pneg %p2338
      $region42: #{tpu_custom_call.1} parent=5 // pred_check_branch
        %2341 = sbr.rel (%p2339) target = $region44
      $region43: #{tpu_custom_call.1} parent=5 // pred_region
        %s2342 = ssub.s32 %s17, 2
        // Predicated region
        $region45: #{tpu_custom_call.1} parent=43 // pred_check
          %p2343 = pneg %p98
        $region46: #{tpu_custom_call.1} parent=43 // pred_check_branch
          %2345 = sbr.rel (%p2343) target = $region48
        $region47: #{tpu_custom_call.1} parent=43 // pred_region
          %s2346 = sand.u32 %s83, 1
          %s2347 = scalar_lea.sflag [#allocation4], %s2346
          %s2348 = sand.u32 %s83, 1
          %s2349 = smul.addr %s2348, 768
          %s2350 = scalar_lea.vmem [#allocation7], %s2349
          %2352 = dma.done %s2347, 12288
        $region48: #{tpu_custom_call.1} parent=43 // pred_fallthru
          _
      $region44: #{tpu_custom_call.1} parent=5 // pred_fallthru
        _
    $region6: #{tpu_custom_call.1} parent=1 // loop_footer
      %s21 = sadd.s32 1, %s17
    $region7: #{tpu_custom_call.1} parent=1 // loop_footer_branch
      %16 = sbr.rel target = $region3
    $region8: #{tpu_custom_call.1} parent=1 // loop_exit
      _
    %2353 = vsyncpa [#allocation3], 1
    %s2354 = scalar_lea.sflag [#allocation3], 1
    %2355 = vsyncpa %s2354, 1
    %2356 = vsyncpa [#allocation6], 1
    %s2357 = scalar_lea.sflag [#allocation6], 1
    %2358 = vsyncpa %s2357, 1
    %2359 = vsyncpa [#allocation4], 1
    %s2360 = scalar_lea.sflag [#allocation4], 1
    %2361 = vsyncpa %s2360, 1

</llo_original>
